<compile_context>
chip_gen: v7x
topology: tpu7x:2x2x1
jax: 0.10.0
libtpu: 0.0.40
codegen_flags: <defaults>
</compile_context>

<pallas_src>
import functools

import jax
import jax.numpy as jnp
from jax.experimental import pallas as pl
from jax.experimental.pallas import tpu as pltpu


# ----------------------------------------------------------------------------
# Kernel
# ----------------------------------------------------------------------------
def _attn_kernel(x_ref, wqkv_ref, wp_ref, b_ref, o_ref, xc_ref, acc_ref,
                 *, heads_per_group, head_dim, n_valid, compute_dtype):
    """One grid step = (one batch block) x (one head group).

    x_ref:    (bb, Np, C)        resident across the head-group axis
    wqkv_ref: (1, C, 3*G*hd)     fused q|k|v weights of this group (scale folded into q)
    wp_ref:   (1, G, hd, C)      per-head output-projection planes of this group
    b_ref:    (1, C)             proj bias (f32)
    o_ref:    (bb, Np, C)        output block (written once, at the last group)
    xc_ref:   (bb*Np, C)         compute_dtype copy of x, written once at group 0
    acc_ref:  (bb*Np, C)         f32 accumulator over heads, initialized with bias
    """
    g_idx = pl.program_id(1)
    bb, Np, C = x_ref.shape
    G, hd = heads_per_group, head_dim
    Ghd = G * hd
    M = bb * Np
    approx_recip = jnp.dtype(compute_dtype) != jnp.dtype(jnp.float32)

    @pl.when(g_idx == 0)
    def _init():
        # Hoisted x load + cast (reused by every head group of this batch block)
        # and bias-initialized accumulator (saves an epilogue add pass).
        xc_ref[...] = x_ref[...].reshape(M, C).astype(compute_dtype)
        acc_ref[...] = jnp.broadcast_to(b_ref[...], (M, C)).astype(jnp.float32)

    x2d = xc_ref[...]

    # Fused, lane-dense q/k/v projection for this head group: one bf16 MXU
    # matmul with f32 accumulation.  Columns are ordered [q | k | v], each
    # (head-in-group, head_dim) contiguous.
    qkv = jnp.dot(x2d, wqkv_ref[0], preferred_element_type=jnp.float32)  # (M, 3*Ghd)

    # Key-padding mask (only materialized when N was padded), hoisted out of
    # the per-head loop.
    kmask = None
    if n_valid != Np:
        kmask = jax.lax.broadcasted_iota(jnp.int32, (bb, Np, Np), 2) < n_valid

    for h in range(G):
        lo = h * hd
        q3 = qkv[:, lo:lo + hd].reshape(bb, Np, hd).astype(compute_dtype)
        k3 = qkv[:, Ghd + lo:Ghd + lo + hd].reshape(bb, Np, hd).astype(compute_dtype)
        v3 = qkv[:, 2 * Ghd + lo:2 * Ghd + lo + hd].reshape(bb, Np, hd).astype(compute_dtype)

        # Scores (softmax scale pre-folded into the q weights); bf16 MXU
        # operands, f32 results and f32 softmax statistics.
        s = jnp.einsum('bqd,bkd->bqk', q3, k3,
                       preferred_element_type=jnp.float32)               # (bb, Np, Np)
        if kmask is not None:
            s = jnp.where(kmask, s, jnp.float32(-1e30))
        m = jnp.max(s, axis=-1, keepdims=True)
        p = jnp.exp(s - m)
        l = jnp.sum(p, axis=-1, keepdims=True)                           # (bb, Np, 1)

        # Deferred normalization: rescale the (Np, hd) output, not the (Np, Np)
        # probabilities; reciprocal goes to the (otherwise idle) EUP slot.
        o = jnp.einsum('bqk,bkd->bqd', p.astype(compute_dtype), v3,
                       preferred_element_type=jnp.float32)               # (bb, Np, hd)
        o = o * pl.reciprocal(l, approx=approx_recip)

        # This head's contribution to the output projection, accumulated in f32.
        acc_ref[...] += jnp.dot(o.reshape(M, hd).astype(compute_dtype),
                                wp_ref[0, h],
                                preferred_element_type=jnp.float32)      # (M, C)

    @pl.when(g_idx == pl.num_programs(1) - 1)
    def _finalize():
        o_ref[...] = acc_ref[...].reshape(bb, Np, C).astype(o_ref.dtype)


# ----------------------------------------------------------------------------
# Host-side helpers
# ----------------------------------------------------------------------------
def _pick_heads_per_group(num_heads, head_dim, lane_target=256):
    """Largest divisor of num_heads with G*head_dim <= lane_target (>=1)."""
    G = max(1, min(num_heads, lane_target // max(head_dim, 1)))
    while num_heads % G != 0:
        G -= 1
    return G


def _vmem_limit_bytes():
    """Scoped VMEM limit: ~3/4 of physical, capped at 96 MiB (v7x-safe)."""
    try:
        phys = int(pltpu.get_tpu_info().vmem_capacity_bytes)
    except Exception:
        phys = 64 << 20  # conservative: v7x has 64 MiB per TensorCore
    return min(max(phys * 3 // 4, 32 << 20), 96 << 20)


def _pick_batch_block(B, Np, C, Ghd, hd, x_bytes, cd_bytes, budget_bytes):
    """Largest divisor of B (capped at B//2 for dual-TC parallelism) whose
    per-step VMEM footprint estimate fits the budget."""
    def estimate(bb):
        M = bb * Np
        io = 4 * M * C * x_bytes                           # x + out, double-buffered
        scratch = M * C * (cd_bytes + 4)                   # xc + f32 accumulator
        weights = 2 * 4 * C * Ghd * cd_bytes               # double-buffered group weights
        temps = (M * 3 * Ghd * 4                           # fused q/k/v projection (f32)
                 + 2 * bb * Np * Np * 4                    # scores + probs (f32)
                 + M * hd * 4                              # per-head attention output
                 + M * C * 4)                              # per-head proj contribution
        return io + scratch + weights + temps

    cap = max(1, B // 2)  # keep >= 2 steps on the "parallel" axis (v7x dual TC)
    best = 1
    for bb in range(1, cap + 1):
        if B % bb == 0 and estimate(bb) <= budget_bytes:
            best = bb
    return best


def prepare_weights(w_qkv, w_proj, b_proj, *, num_heads,
                    compute_dtype=jnp.bfloat16):
    """One-time weight re-layout (cache the result for repeated forward calls).

    w_qkv: (C, 3C), w_proj: (C, C), b_proj: (C,), all (in, out) layout.
    """
    C = w_qkv.shape[0]
    assert w_qkv.shape == (C, 3 * C) and w_proj.shape == (C, C)
    assert C % num_heads == 0, "dim should be divisible by num_heads"
    hd = C // num_heads
    scale = hd ** -0.5
    G = _pick_heads_per_group(num_heads, hd)
    ng = num_heads // G
    Ghd = G * hd

    # Per-group planes; softmax scale folded into q; pre-cast to compute_dtype.
    wq = w_qkv[:, 0:C].reshape(C, ng, Ghd) * scale
    wk = w_qkv[:, C:2 * C].reshape(C, ng, Ghd)
    wv = w_qkv[:, 2 * C:3 * C].reshape(C, ng, Ghd)
    wqkv_g = jnp.transpose(jnp.concatenate([wq, wk, wv], axis=-1),
                           (1, 0, 2)).astype(compute_dtype)      # (ng, C, 3*Ghd)
    wp_g = w_proj.reshape(ng, G, hd, C).astype(compute_dtype)    # (ng, G, hd, C)
    bias = b_proj.reshape(1, C).astype(jnp.float32)

    return {"wqkv": wqkv_g, "wp": wp_g, "bias": bias,
            "heads_per_group": G, "head_dim": hd,
            "compute_dtype": compute_dtype}


def self_attention_timm_prepared(x, params, *, batch_block=None):
    """Forward pass with pre-laid-out weights (see prepare_weights)."""
    B, N, C = x.shape
    G = params["heads_per_group"]
    hd = params["head_dim"]
    compute_dtype = params["compute_dtype"]
    Ghd = G * hd
    num_groups = params["wqkv"].shape[0]

    # Pad tokens to a multiple of 8 sublanes (dense stores / layout-free
    # reshapes); padded key columns are masked in-kernel, padded query rows
    # are sliced off below.
    Np = -(-N // 8) * 8
    xp = x if Np == N else jnp.pad(x, ((0, 0), (0, Np - N), (0, 0)))

    vmem_limit = _vmem_limit_bytes()
    if batch_block is None:
        batch_block = _pick_batch_block(
            B, Np, C, Ghd, hd,
            x_bytes=x.dtype.itemsize,
            cd_bytes=jnp.dtype(compute_dtype).itemsize,
            budget_bytes=vmem_limit // 2)   # headroom for estimate slop
    bb = batch_block
    assert B % bb == 0

    kernel = functools.partial(_attn_kernel, heads_per_group=G, head_dim=hd,
                               n_valid=N, compute_dtype=compute_dtype)

    out = pl.pallas_call(
        kernel,
        out_shape=jax.ShapeDtypeStruct((B, Np, C), x.dtype),
        grid=(B // bb, num_groups),
        in_specs=[
            pl.BlockSpec((bb, Np, C), lambda b, g: (b, 0, 0)),        # x (resident over groups)
            pl.BlockSpec((1, C, 3 * Ghd), lambda b, g: (g, 0, 0)),    # fused q|k|v weights
            pl.BlockSpec((1, G, hd, C), lambda b, g: (g, 0, 0, 0)),   # per-head proj planes
            pl.BlockSpec((1, C), lambda b, g: (0, 0)),                # proj bias
        ],
        out_specs=pl.BlockSpec((bb, Np, C), lambda b, g: (b, 0, 0)),
        scratch_shapes=[
            pltpu.VMEM((bb * Np, C), compute_dtype),   # x cast, hoisted over the group axis
            pltpu.VMEM((bb * Np, C), jnp.float32),     # output-projection accumulator
        ],
        compiler_params=pltpu.CompilerParams(
            dimension_semantics=("parallel", "arbitrary"),
            vmem_limit_bytes=vmem_limit),
    )(xp, params["wqkv"], params["wp"], params["bias"])

    if Np != N:
        out = out[:, :N, :]
    return out


def self_attention_timm(x, w_qkv, w_proj, b_proj, *, num_heads,
                        compute_dtype=jnp.bfloat16, batch_block=None):
    """x: (B, N, C). w_qkv: (C, 3C). w_proj: (C, C). b_proj: (C,).

    For repeated calls, do `params = prepare_weights(...)` once (outside the
    hot path) and call `self_attention_timm_prepared(x, params)` directly.
    """
    params = prepare_weights(w_qkv, w_proj, b_proj, num_heads=num_heads,
                             compute_dtype=compute_dtype)
    return self_attention_timm_prepared(x, params, batch_block=batch_block)


# ----------------------------------------------------------------------------
# Reference & self-test
# ----------------------------------------------------------------------------
def _reference(x, w_qkv, w_proj, b_proj, *, num_heads):
    """Plain-JAX replica of the PyTorch forward, for verification."""
    B, N, C = x.shape
    hd = C // num_heads
    scale = hd ** -0.5
    qkv = x @ w_qkv                                        # (B, N, 3C)
    qkv = qkv.reshape(B, N, 3, num_heads, hd).transpose(2, 0, 3, 1, 4)
    q, k, v = qkv[0], qkv[1], qkv[2]                       # (B, H, N, hd)
    attn = (q @ jnp.swapaxes(k, -2, -1)) * scale
    attn = jax.nn.softmax(attn, axis=-1)
    out = (attn @ v).transpose(0, 2, 1, 3).reshape(B, N, C)
    return out @ w_proj + b_proj


if __name__ == "__main__":
    # Small shapes consistent with the module: dim divisible by num_heads.
    B, N, C = 2, 16, 32
    num_heads = 8

    key = jax.random.PRNGKey(0)
    kx, kw1, kw2, kb = jax.random.split(key, 4)

    x = jax.random.normal(kx, (B, N, C), dtype=jnp.float32)
    # qkv_bias=False in the module, so only a weight for qkv.
    w_qkv = 0.05 * jax.random.normal(kw1, (C, 3 * C), dtype=jnp.float32)
    w_proj = 0.05 * jax.random.normal(kw2, (C, C), dtype=jnp.float32)
    b_proj = 0.05 * jax.random.normal(kb, (C,), dtype=jnp.float32)

    ref = _reference(x, w_qkv, w_proj, b_proj, num_heads=num_heads)

    # Default path: bf16 MXU operands, f32 accumulation / softmax stats.
    out = self_attention_timm(x, w_qkv, w_proj, b_proj, num_heads=num_heads)
    out = jax.block_until_ready(out)
    assert out.shape == (B, N, C)
    assert jnp.allclose(out, ref, atol=2e-2, rtol=2e-2), "bf16 kernel mismatch vs reference"

    # f32 compute path: tight numerical check of the kernel structure.
    out_f32 = self_attention_timm(x, w_qkv, w_proj, b_proj, num_heads=num_heads,
                                  compute_dtype=jnp.float32)
    out_f32 = jax.block_until_ready(out_f32)
    assert jnp.allclose(out_f32, ref, atol=1e-4, rtol=1e-4), "f32 kernel mismatch vs reference"

    # Non-multiple-of-8 token count exercises the padding + key-mask path.
    N2 = 13
    x2 = jax.random.normal(jax.random.PRNGKey(1), (B, N2, C), dtype=jnp.float32)
    ref2 = _reference(x2, w_qkv, w_proj, b_proj, num_heads=num_heads)
    out2 = self_attention_timm(x2, w_qkv, w_proj, b_proj, num_heads=num_heads,
                               compute_dtype=jnp.float32)
    out2 = jax.block_until_ready(out2)
    assert out2.shape == (B, N2, C)
    assert jnp.allclose(out2, ref2, atol=1e-4, rtol=1e-4), "padded-N kernel mismatch"

    print("KERNEL_OK")
</pallas_src>

<mosaic_0001>
module attributes {stable_mosaic.version = 11 : i64} {
  func.func @_attn_kernel(%arg0: i32, %arg1: i32, %arg2: memref<1x16x32xf32, #tpu.memory_space<vmem>>, %arg3: memref<1x32x96xbf16, #tpu.memory_space<vmem>>, %arg4: memref<1x8x4x32xbf16, #tpu.memory_space<vmem>>, %arg5: memref<1x32xf32, #tpu.memory_space<vmem>>, %arg6: memref<1x16x32xf32, #tpu.memory_space<vmem>>, %arg7: memref<16x32xbf16, #tpu.memory_space<vmem>>, %arg8: memref<16x32xf32, #tpu.memory_space<vmem>>) attributes {dimension_semantics = [#tpu.dimension_semantics<parallel>, #tpu.dimension_semantics<arbitrary>], iteration_bounds = array<i64: 2, 1>, scalar_prefetch = 0 : i64, scratch_operands = 2 : i64, tpu.core_type = #tpu.core_type<tc>, window_params = [{transform_indices = @transform_0, window_bounds = array<i64: 1, 16, 32>}, {transform_indices = @transform_1, window_bounds = array<i64: 1, 32, 96>}, {transform_indices = @transform_2, window_bounds = array<i64: 1, 8, 4, 32>}, {pipeline_mode = #tpu.pipeline_mode<synchronous>, transform_indices = @transform_3, window_bounds = array<i64: 1, 32>}, {transform_indices = @transform_4, window_bounds = array<i64: 1, 16, 32>}]} {
    %c0_i32 = arith.constant 0 : i32
    %0 = arith.cmpi eq, %arg1, %c0_i32 : i32
    %1 = arith.extui %0 : i1 to i32
    %c0_i32_0 = arith.constant 0 : i32
    %2 = arith.cmpi ne, %1, %c0_i32_0 : i32
    scf.if %2 {
      %c0_104 = arith.constant 0 : index
      %c0_105 = arith.constant 0 : index
      %c0_106 = arith.constant 0 : index
      %250 = vector.load %arg2[%c0_104, %c0_105, %c0_106] : memref<1x16x32xf32, #tpu.memory_space<vmem>>, vector<1x16x32xf32>
      %251 = vector.shape_cast %250 : vector<1x16x32xf32> to vector<16x32xf32>
      %252 = arith.truncf %251 : vector<16x32xf32> to vector<16x32xbf16>
      %c0_107 = arith.constant 0 : index
      %c0_108 = arith.constant 0 : index
      %253 = vector.load %arg7[%c0_107, %c0_108] : memref<16x32xbf16, #tpu.memory_space<vmem>>, vector<16x32xbf16>
      tpu.vector_store %arg7[%c0_107, %c0_108], %252 {strides = array<i32>} : memref<16x32xbf16, #tpu.memory_space<vmem>>, vector<16x32xbf16>,
      %c0_109 = arith.constant 0 : index
      %c0_110 = arith.constant 0 : index
      %254 = vector.load %arg5[%c0_109, %c0_110] : memref<1x32xf32, #tpu.memory_space<vmem>>, vector<1x32xf32>
      %255 = vector.shape_cast %254 : vector<1x32xf32> to vector<1x32xf32>
      %256 = vector.broadcast %255 : vector<1x32xf32> to vector<16x32xf32>
      %c0_111 = arith.constant 0 : index
      %c0_112 = arith.constant 0 : index
      %257 = vector.load %arg8[%c0_111, %c0_112] : memref<16x32xf32, #tpu.memory_space<vmem>>, vector<16x32xf32>
      tpu.vector_store %arg8[%c0_111, %c0_112], %256 {strides = array<i32>} : memref<16x32xf32, #tpu.memory_space<vmem>>, vector<16x32xf32>,
    } else {
    }
    %c0 = arith.constant 0 : index
    %c0_1 = arith.constant 0 : index
    %3 = vector.load %arg7[%c0, %c0_1] : memref<16x32xbf16, #tpu.memory_space<vmem>>, vector<16x32xbf16>
    %c0_2 = arith.constant 0 : index
    %c0_3 = arith.constant 0 : index
    %c0_4 = arith.constant 0 : index
    %4 = vector.load %arg3[%c0_2, %c0_3, %c0_4] : memref<1x32x96xbf16, #tpu.memory_space<vmem>>, vector<1x32x96xbf16>
    %5 = vector.shape_cast %4 : vector<1x32x96xbf16> to vector<32x96xbf16>
    %cst = arith.constant dense<0.000000e+00> : vector<16x96xf32>
    %6 = tpu.matmul %3, %5, %cst {dimension_numbers = #tpu.dot_dimension_numbers<[1], [0], [0], [1], [0, 0, 1, 1], [], []>} : vector<16x32xbf16>, vector<32x96xbf16>, vector<16x96xf32> -> vector<16x96xf32>
    %7 = vector.extract_strided_slice %6 {offsets = [0, 0], sizes = [16, 4], strides = [1, 1]} : vector<16x96xf32> to vector<16x4xf32>
    %8 = vector.shape_cast %7 : vector<16x4xf32> to vector<1x16x4xf32>
    %9 = arith.truncf %8 : vector<1x16x4xf32> to vector<1x16x4xbf16>
    %10 = vector.extract_strided_slice %6 {offsets = [0, 32], sizes = [16, 4], strides = [1, 1]} : vector<16x96xf32> to vector<16x4xf32>
    %11 = vector.shape_cast %10 : vector<16x4xf32> to vector<1x16x4xf32>
    %12 = arith.truncf %11 : vector<1x16x4xf32> to vector<1x16x4xbf16>
    %13 = vector.extract_strided_slice %6 {offsets = [0, 64], sizes = [16, 4], strides = [1, 1]} : vector<16x96xf32> to vector<16x4xf32>
    %14 = vector.shape_cast %13 : vector<16x4xf32> to vector<1x16x4xf32>
    %15 = arith.truncf %14 : vector<1x16x4xf32> to vector<1x16x4xbf16>
    "tpu.trace_start"() <{level = 10 : i32, message = "bqd,bkd->bqk"}> : () -> ()
    %cst_5 = arith.constant dense<0.000000e+00> : vector<1x16x16xf32>
    %16 = tpu.matmul %9, %12, %cst_5 {dimension_numbers = #tpu.dot_dimension_numbers<[2], [2], [1], [1], [0, 0, 0, 1, 1, 1], [0], [0]>} : vector<1x16x4xbf16>, vector<1x16x4xbf16>, vector<1x16x16xf32> -> vector<1x16x16xf32>
    "tpu.trace_stop"() : () -> ()
    %cst_6 = arith.constant dense<0xFF800000> : vector<1x16xf32>
    %17 = vector.multi_reduction <maximumf>, %16, %cst_6 [2] : vector<1x16x16xf32> to vector<1x16xf32>
    %18 = vector.shape_cast %17 : vector<1x16xf32> to vector<1x16x1xf32>
    %19 = vector.broadcast %18 : vector<1x16x1xf32> to vector<1x16x16xf32>
    %20 = arith.subf %16, %19 : vector<1x16x16xf32>
    %21 = math.exp %20 : vector<1x16x16xf32>
    %cst_7 = arith.constant dense<0.000000e+00> : vector<1x16xf32>
    %22 = vector.multi_reduction <add>, %21, %cst_7 [2] : vector<1x16x16xf32> to vector<1x16xf32>
    %23 = vector.shape_cast %22 : vector<1x16xf32> to vector<1x16x1xf32>
    %24 = arith.truncf %21 : vector<1x16x16xf32> to vector<1x16x16xbf16>
    "tpu.trace_start"() <{level = 10 : i32, message = "bqk,bkd->bqd"}> : () -> ()
    %cst_8 = arith.constant dense<0.000000e+00> : vector<1x16x4xf32>
    %25 = tpu.matmul %24, %15, %cst_8 {dimension_numbers = #tpu.dot_dimension_numbers<[2], [1], [1], [2], [0, 0, 0, 1, 1, 2], [0], [0]>} : vector<1x16x16xbf16>, vector<1x16x4xbf16>, vector<1x16x4xf32> -> vector<1x16x4xf32>
    "tpu.trace_stop"() : () -> ()
    %26 = tpu.reciprocal %23 {approx = true} : vector<1x16x1xf32> -> vector<1x16x1xf32>
    %27 = vector.broadcast %26 : vector<1x16x1xf32> to vector<1x16x4xf32>
    %28 = arith.mulf %25, %27 : vector<1x16x4xf32>
    %c0_9 = arith.constant 0 : index
    %c0_10 = arith.constant 0 : index
    %29 = vector.load %arg8[%c0_9, %c0_10] : memref<16x32xf32, #tpu.memory_space<vmem>>, vector<16x32xf32>
    %30 = vector.shape_cast %28 : vector<1x16x4xf32> to vector<16x4xf32>
    %31 = arith.truncf %30 : vector<16x4xf32> to vector<16x4xbf16>
    %c0_11 = arith.constant 0 : index
    %c0_12 = arith.constant 0 : index
    %c0_13 = arith.constant 0 : index
    %c0_14 = arith.constant 0 : index
    %32 = vector.load %arg4[%c0_11, %c0_12, %c0_13, %c0_14] : memref<1x8x4x32xbf16, #tpu.memory_space<vmem>>, vector<1x1x4x32xbf16>
    %33 = vector.shape_cast %32 : vector<1x1x4x32xbf16> to vector<4x32xbf16>
    %cst_15 = arith.constant dense<0.000000e+00> : vector<16x32xf32>
    %34 = tpu.matmul %31, %33, %cst_15 {dimension_numbers = #tpu.dot_dimension_numbers<[1], [0], [0], [1], [0, 0, 1, 1], [], []>} : vector<16x4xbf16>, vector<4x32xbf16>, vector<16x32xf32> -> vector<16x32xf32>
    %35 = arith.addf %29, %34 : vector<16x32xf32>
    %c0_16 = arith.constant 0 : index
    %c0_17 = arith.constant 0 : index
    %36 = vector.load %arg8[%c0_16, %c0_17] : memref<16x32xf32, #tpu.memory_space<vmem>>, vector<16x32xf32>
    tpu.vector_store %arg8[%c0_16, %c0_17], %35 {strides = array<i32>} : memref<16x32xf32, #tpu.memory_space<vmem>>, vector<16x32xf32>,
    %37 = vector.extract_strided_slice %6 {offsets = [0, 4], sizes = [16, 4], strides = [1, 1]} : vector<16x96xf32> to vector<16x4xf32>
    %38 = vector.shape_cast %37 : vector<16x4xf32> to vector<1x16x4xf32>
    %39 = arith.truncf %38 : vector<1x16x4xf32> to vector<1x16x4xbf16>
    %40 = vector.extract_strided_slice %6 {offsets = [0, 36], sizes = [16, 4], strides = [1, 1]} : vector<16x96xf32> to vector<16x4xf32>
    %41 = vector.shape_cast %40 : vector<16x4xf32> to vector<1x16x4xf32>
    %42 = arith.truncf %41 : vector<1x16x4xf32> to vector<1x16x4xbf16>
    %43 = vector.extract_strided_slice %6 {offsets = [0, 68], sizes = [16, 4], strides = [1, 1]} : vector<16x96xf32> to vector<16x4xf32>
    %44 = vector.shape_cast %43 : vector<16x4xf32> to vector<1x16x4xf32>
    %45 = arith.truncf %44 : vector<1x16x4xf32> to vector<1x16x4xbf16>
    "tpu.trace_start"() <{level = 10 : i32, message = "bqd,bkd->bqk"}> : () -> ()
    %cst_18 = arith.constant dense<0.000000e+00> : vector<1x16x16xf32>
    %46 = tpu.matmul %39, %42, %cst_18 {dimension_numbers = #tpu.dot_dimension_numbers<[2], [2], [1], [1], [0, 0, 0, 1, 1, 1], [0], [0]>} : vector<1x16x4xbf16>, vector<1x16x4xbf16>, vector<1x16x16xf32> -> vector<1x16x16xf32>
    "tpu.trace_stop"() : () -> ()
    %cst_19 = arith.constant dense<0xFF800000> : vector<1x16xf32>
    %47 = vector.multi_reduction <maximumf>, %46, %cst_19 [2] : vector<1x16x16xf32> to vector<1x16xf32>
    %48 = vector.shape_cast %47 : vector<1x16xf32> to vector<1x16x1xf32>
    %49 = vector.broadcast %48 : vector<1x16x1xf32> to vector<1x16x16xf32>
    %50 = arith.subf %46, %49 : vector<1x16x16xf32>
    %51 = math.exp %50 : vector<1x16x16xf32>
    %cst_20 = arith.constant dense<0.000000e+00> : vector<1x16xf32>
    %52 = vector.multi_reduction <add>, %51, %cst_20 [2] : vector<1x16x16xf32> to vector<1x16xf32>
    %53 = vector.shape_cast %52 : vector<1x16xf32> to vector<1x16x1xf32>
    %54 = arith.truncf %51 : vector<1x16x16xf32> to vector<1x16x16xbf16>
    "tpu.trace_start"() <{level = 10 : i32, message = "bqk,bkd->bqd"}> : () -> ()
    %cst_21 = arith.constant dense<0.000000e+00> : vector<1x16x4xf32>
    %55 = tpu.matmul %54, %45, %cst_21 {dimension_numbers = #tpu.dot_dimension_numbers<[2], [1], [1], [2], [0, 0, 0, 1, 1, 2], [0], [0]>} : vector<1x16x16xbf16>, vector<1x16x4xbf16>, vector<1x16x4xf32> -> vector<1x16x4xf32>
    "tpu.trace_stop"() : () -> ()
    %56 = tpu.reciprocal %53 {approx = true} : vector<1x16x1xf32> -> vector<1x16x1xf32>
    %57 = vector.broadcast %56 : vector<1x16x1xf32> to vector<1x16x4xf32>
    %58 = arith.mulf %55, %57 : vector<1x16x4xf32>
    %c0_22 = arith.constant 0 : index
    %c0_23 = arith.constant 0 : index
    %59 = vector.load %arg8[%c0_22, %c0_23] : memref<16x32xf32, #tpu.memory_space<vmem>>, vector<16x32xf32>
    %60 = vector.shape_cast %58 : vector<1x16x4xf32> to vector<16x4xf32>
    %61 = arith.truncf %60 : vector<16x4xf32> to vector<16x4xbf16>
    %c0_24 = arith.constant 0 : index
    %c1 = arith.constant 1 : index
    %c0_25 = arith.constant 0 : index
    %c0_26 = arith.constant 0 : index
    %62 = vector.load %arg4[%c0_24, %c1, %c0_25, %c0_26] : memref<1x8x4x32xbf16, #tpu.memory_space<vmem>>, vector<1x1x4x32xbf16>
    %63 = vector.shape_cast %62 : vector<1x1x4x32xbf16> to vector<4x32xbf16>
    %cst_27 = arith.constant dense<0.000000e+00> : vector<16x32xf32>
    %64 = tpu.matmul %61, %63, %cst_27 {dimension_numbers = #tpu.dot_dimension_numbers<[1], [0], [0], [1], [0, 0, 1, 1], [], []>} : vector<16x4xbf16>, vector<4x32xbf16>, vector<16x32xf32> -> vector<16x32xf32>
    %65 = arith.addf %59, %64 : vector<16x32xf32>
    %c0_28 = arith.constant 0 : index
    %c0_29 = arith.constant 0 : index
    %66 = vector.load %arg8[%c0_28, %c0_29] : memref<16x32xf32, #tpu.memory_space<vmem>>, vector<16x32xf32>
    tpu.vector_store %arg8[%c0_28, %c0_29], %65 {strides = array<i32>} : memref<16x32xf32, #tpu.memory_space<vmem>>, vector<16x32xf32>,
    %67 = vector.extract_strided_slice %6 {offsets = [0, 8], sizes = [16, 4], strides = [1, 1]} : vector<16x96xf32> to vector<16x4xf32>
    %68 = vector.shape_cast %67 : vector<16x4xf32> to vector<1x16x4xf32>
    %69 = arith.truncf %68 : vector<1x16x4xf32> to vector<1x16x4xbf16>
    %70 = vector.extract_strided_slice %6 {offsets = [0, 40], sizes = [16, 4], strides = [1, 1]} : vector<16x96xf32> to vector<16x4xf32>
    %71 = vector.shape_cast %70 : vector<16x4xf32> to vector<1x16x4xf32>
    %72 = arith.truncf %71 : vector<1x16x4xf32> to vector<1x16x4xbf16>
    %73 = vector.extract_strided_slice %6 {offsets = [0, 72], sizes = [16, 4], strides = [1, 1]} : vector<16x96xf32> to vector<16x4xf32>
    %74 = vector.shape_cast %73 : vector<16x4xf32> to vector<1x16x4xf32>
    %75 = arith.truncf %74 : vector<1x16x4xf32> to vector<1x16x4xbf16>
    "tpu.trace_start"() <{level = 10 : i32, message = "bqd,bkd->bqk"}> : () -> ()
    %cst_30 = arith.constant dense<0.000000e+00> : vector<1x16x16xf32>
    %76 = tpu.matmul %69, %72, %cst_30 {dimension_numbers = #tpu.dot_dimension_numbers<[2], [2], [1], [1], [0, 0, 0, 1, 1, 1], [0], [0]>} : vector<1x16x4xbf16>, vector<1x16x4xbf16>, vector<1x16x16xf32> -> vector<1x16x16xf32>
    "tpu.trace_stop"() : () -> ()
    %cst_31 = arith.constant dense<0xFF800000> : vector<1x16xf32>
    %77 = vector.multi_reduction <maximumf>, %76, %cst_31 [2] : vector<1x16x16xf32> to vector<1x16xf32>
    %78 = vector.shape_cast %77 : vector<1x16xf32> to vector<1x16x1xf32>
    %79 = vector.broadcast %78 : vector<1x16x1xf32> to vector<1x16x16xf32>
    %80 = arith.subf %76, %79 : vector<1x16x16xf32>
    %81 = math.exp %80 : vector<1x16x16xf32>
    %cst_32 = arith.constant dense<0.000000e+00> : vector<1x16xf32>
    %82 = vector.multi_reduction <add>, %81, %cst_32 [2] : vector<1x16x16xf32> to vector<1x16xf32>
    %83 = vector.shape_cast %82 : vector<1x16xf32> to vector<1x16x1xf32>
    %84 = arith.truncf %81 : vector<1x16x16xf32> to vector<1x16x16xbf16>
    "tpu.trace_start"() <{level = 10 : i32, message = "bqk,bkd->bqd"}> : () -> ()
    %cst_33 = arith.constant dense<0.000000e+00> : vector<1x16x4xf32>
    %85 = tpu.matmul %84, %75, %cst_33 {dimension_numbers = #tpu.dot_dimension_numbers<[2], [1], [1], [2], [0, 0, 0, 1, 1, 2], [0], [0]>} : vector<1x16x16xbf16>, vector<1x16x4xbf16>, vector<1x16x4xf32> -> vector<1x16x4xf32>
    "tpu.trace_stop"() : () -> ()
    %86 = tpu.reciprocal %83 {approx = true} : vector<1x16x1xf32> -> vector<1x16x1xf32>
    %87 = vector.broadcast %86 : vector<1x16x1xf32> to vector<1x16x4xf32>
    %88 = arith.mulf %85, %87 : vector<1x16x4xf32>
    %c0_34 = arith.constant 0 : index
    %c0_35 = arith.constant 0 : index
    %89 = vector.load %arg8[%c0_34, %c0_35] : memref<16x32xf32, #tpu.memory_space<vmem>>, vector<16x32xf32>
    %90 = vector.shape_cast %88 : vector<1x16x4xf32> to vector<16x4xf32>
    %91 = arith.truncf %90 : vector<16x4xf32> to vector<16x4xbf16>
    %c0_36 = arith.constant 0 : index
    %c2 = arith.constant 2 : index
    %c0_37 = arith.constant 0 : index
    %c0_38 = arith.constant 0 : index
    %92 = vector.load %arg4[%c0_36, %c2, %c0_37, %c0_38] : memref<1x8x4x32xbf16, #tpu.memory_space<vmem>>, vector<1x1x4x32xbf16>
    %93 = vector.shape_cast %92 : vector<1x1x4x32xbf16> to vector<4x32xbf16>
    %cst_39 = arith.constant dense<0.000000e+00> : vector<16x32xf32>
    %94 = tpu.matmul %91, %93, %cst_39 {dimension_numbers = #tpu.dot_dimension_numbers<[1], [0], [0], [1], [0, 0, 1, 1], [], []>} : vector<16x4xbf16>, vector<4x32xbf16>, vector<16x32xf32> -> vector<16x32xf32>
    %95 = arith.addf %89, %94 : vector<16x32xf32>
    %c0_40 = arith.constant 0 : index
    %c0_41 = arith.constant 0 : index
    %96 = vector.load %arg8[%c0_40, %c0_41] : memref<16x32xf32, #tpu.memory_space<vmem>>, vector<16x32xf32>
    tpu.vector_store %arg8[%c0_40, %c0_41], %95 {strides = array<i32>} : memref<16x32xf32, #tpu.memory_space<vmem>>, vector<16x32xf32>,
    %97 = vector.extract_strided_slice %6 {offsets = [0, 12], sizes = [16, 4], strides = [1, 1]} : vector<16x96xf32> to vector<16x4xf32>
    %98 = vector.shape_cast %97 : vector<16x4xf32> to vector<1x16x4xf32>
    %99 = arith.truncf %98 : vector<1x16x4xf32> to vector<1x16x4xbf16>
    %100 = vector.extract_strided_slice %6 {offsets = [0, 44], sizes = [16, 4], strides = [1, 1]} : vector<16x96xf32> to vector<16x4xf32>
    %101 = vector.shape_cast %100 : vector<16x4xf32> to vector<1x16x4xf32>
    %102 = arith.truncf %101 : vector<1x16x4xf32> to vector<1x16x4xbf16>
    %103 = vector.extract_strided_slice %6 {offsets = [0, 76], sizes = [16, 4], strides = [1, 1]} : vector<16x96xf32> to vector<16x4xf32>
    %104 = vector.shape_cast %103 : vector<16x4xf32> to vector<1x16x4xf32>
    %105 = arith.truncf %104 : vector<1x16x4xf32> to vector<1x16x4xbf16>
    "tpu.trace_start"() <{level = 10 : i32, message = "bqd,bkd->bqk"}> : () -> ()
    %cst_42 = arith.constant dense<0.000000e+00> : vector<1x16x16xf32>
    %106 = tpu.matmul %99, %102, %cst_42 {dimension_numbers = #tpu.dot_dimension_numbers<[2], [2], [1], [1], [0, 0, 0, 1, 1, 1], [0], [0]>} : vector<1x16x4xbf16>, vector<1x16x4xbf16>, vector<1x16x16xf32> -> vector<1x16x16xf32>
    "tpu.trace_stop"() : () -> ()
    %cst_43 = arith.constant dense<0xFF800000> : vector<1x16xf32>
    %107 = vector.multi_reduction <maximumf>, %106, %cst_43 [2] : vector<1x16x16xf32> to vector<1x16xf32>
    %108 = vector.shape_cast %107 : vector<1x16xf32> to vector<1x16x1xf32>
    %109 = vector.broadcast %108 : vector<1x16x1xf32> to vector<1x16x16xf32>
    %110 = arith.subf %106, %109 : vector<1x16x16xf32>
    %111 = math.exp %110 : vector<1x16x16xf32>
    %cst_44 = arith.constant dense<0.000000e+00> : vector<1x16xf32>
    %112 = vector.multi_reduction <add>, %111, %cst_44 [2] : vector<1x16x16xf32> to vector<1x16xf32>
    %113 = vector.shape_cast %112 : vector<1x16xf32> to vector<1x16x1xf32>
    %114 = arith.truncf %111 : vector<1x16x16xf32> to vector<1x16x16xbf16>
    "tpu.trace_start"() <{level = 10 : i32, message = "bqk,bkd->bqd"}> : () -> ()
    %cst_45 = arith.constant dense<0.000000e+00> : vector<1x16x4xf32>
    %115 = tpu.matmul %114, %105, %cst_45 {dimension_numbers = #tpu.dot_dimension_numbers<[2], [1], [1], [2], [0, 0, 0, 1, 1, 2], [0], [0]>} : vector<1x16x16xbf16>, vector<1x16x4xbf16>, vector<1x16x4xf32> -> vector<1x16x4xf32>
    "tpu.trace_stop"() : () -> ()
    %116 = tpu.reciprocal %113 {approx = true} : vector<1x16x1xf32> -> vector<1x16x1xf32>
    %117 = vector.broadcast %116 : vector<1x16x1xf32> to vector<1x16x4xf32>
    %118 = arith.mulf %115, %117 : vector<1x16x4xf32>
    %c0_46 = arith.constant 0 : index
    %c0_47 = arith.constant 0 : index
    %119 = vector.load %arg8[%c0_46, %c0_47] : memref<16x32xf32, #tpu.memory_space<vmem>>, vector<16x32xf32>
    %120 = vector.shape_cast %118 : vector<1x16x4xf32> to vector<16x4xf32>
    %121 = arith.truncf %120 : vector<16x4xf32> to vector<16x4xbf16>
    %c0_48 = arith.constant 0 : index
    %c3 = arith.constant 3 : index
    %c0_49 = arith.constant 0 : index
    %c0_50 = arith.constant 0 : index
    %122 = vector.load %arg4[%c0_48, %c3, %c0_49, %c0_50] : memref<1x8x4x32xbf16, #tpu.memory_space<vmem>>, vector<1x1x4x32xbf16>
    %123 = vector.shape_cast %122 : vector<1x1x4x32xbf16> to vector<4x32xbf16>
    %cst_51 = arith.constant dense<0.000000e+00> : vector<16x32xf32>
    %124 = tpu.matmul %121, %123, %cst_51 {dimension_numbers = #tpu.dot_dimension_numbers<[1], [0], [0], [1], [0, 0, 1, 1], [], []>} : vector<16x4xbf16>, vector<4x32xbf16>, vector<16x32xf32> -> vector<16x32xf32>
    %125 = arith.addf %119, %124 : vector<16x32xf32>
    %c0_52 = arith.constant 0 : index
    %c0_53 = arith.constant 0 : index
    %126 = vector.load %arg8[%c0_52, %c0_53] : memref<16x32xf32, #tpu.memory_space<vmem>>, vector<16x32xf32>
    tpu.vector_store %arg8[%c0_52, %c0_53], %125 {strides = array<i32>} : memref<16x32xf32, #tpu.memory_space<vmem>>, vector<16x32xf32>,
    %127 = vector.extract_strided_slice %6 {offsets = [0, 16], sizes = [16, 4], strides = [1, 1]} : vector<16x96xf32> to vector<16x4xf32>
    %128 = vector.shape_cast %127 : vector<16x4xf32> to vector<1x16x4xf32>
    %129 = arith.truncf %128 : vector<1x16x4xf32> to vector<1x16x4xbf16>
    %130 = vector.extract_strided_slice %6 {offsets = [0, 48], sizes = [16, 4], strides = [1, 1]} : vector<16x96xf32> to vector<16x4xf32>
    %131 = vector.shape_cast %130 : vector<16x4xf32> to vector<1x16x4xf32>
    %132 = arith.truncf %131 : vector<1x16x4xf32> to vector<1x16x4xbf16>
    %133 = vector.extract_strided_slice %6 {offsets = [0, 80], sizes = [16, 4], strides = [1, 1]} : vector<16x96xf32> to vector<16x4xf32>
    %134 = vector.shape_cast %133 : vector<16x4xf32> to vector<1x16x4xf32>
    %135 = arith.truncf %134 : vector<1x16x4xf32> to vector<1x16x4xbf16>
    "tpu.trace_start"() <{level = 10 : i32, message = "bqd,bkd->bqk"}> : () -> ()
    %cst_54 = arith.constant dense<0.000000e+00> : vector<1x16x16xf32>
    %136 = tpu.matmul %129, %132, %cst_54 {dimension_numbers = #tpu.dot_dimension_numbers<[2], [2], [1], [1], [0, 0, 0, 1, 1, 1], [0], [0]>} : vector<1x16x4xbf16>, vector<1x16x4xbf16>, vector<1x16x16xf32> -> vector<1x16x16xf32>
    "tpu.trace_stop"() : () -> ()
    %cst_55 = arith.constant dense<0xFF800000> : vector<1x16xf32>
    %137 = vector.multi_reduction <maximumf>, %136, %cst_55 [2] : vector<1x16x16xf32> to vector<1x16xf32>
    %138 = vector.shape_cast %137 : vector<1x16xf32> to vector<1x16x1xf32>
    %139 = vector.broadcast %138 : vector<1x16x1xf32> to vector<1x16x16xf32>
    %140 = arith.subf %136, %139 : vector<1x16x16xf32>
    %141 = math.exp %140 : vector<1x16x16xf32>
    %cst_56 = arith.constant dense<0.000000e+00> : vector<1x16xf32>
    %142 = vector.multi_reduction <add>, %141, %cst_56 [2] : vector<1x16x16xf32> to vector<1x16xf32>
    %143 = vector.shape_cast %142 : vector<1x16xf32> to vector<1x16x1xf32>
    %144 = arith.truncf %141 : vector<1x16x16xf32> to vector<1x16x16xbf16>
    "tpu.trace_start"() <{level = 10 : i32, message = "bqk,bkd->bqd"}> : () -> ()
    %cst_57 = arith.constant dense<0.000000e+00> : vector<1x16x4xf32>
    %145 = tpu.matmul %144, %135, %cst_57 {dimension_numbers = #tpu.dot_dimension_numbers<[2], [1], [1], [2], [0, 0, 0, 1, 1, 2], [0], [0]>} : vector<1x16x16xbf16>, vector<1x16x4xbf16>, vector<1x16x4xf32> -> vector<1x16x4xf32>
    "tpu.trace_stop"() : () -> ()
    %146 = tpu.reciprocal %143 {approx = true} : vector<1x16x1xf32> -> vector<1x16x1xf32>
    %147 = vector.broadcast %146 : vector<1x16x1xf32> to vector<1x16x4xf32>
    %148 = arith.mulf %145, %147 : vector<1x16x4xf32>
    %c0_58 = arith.constant 0 : index
    %c0_59 = arith.constant 0 : index
    %149 = vector.load %arg8[%c0_58, %c0_59] : memref<16x32xf32, #tpu.memory_space<vmem>>, vector<16x32xf32>
    %150 = vector.shape_cast %148 : vector<1x16x4xf32> to vector<16x4xf32>
    %151 = arith.truncf %150 : vector<16x4xf32> to vector<16x4xbf16>
    %c0_60 = arith.constant 0 : index
    %c4 = arith.constant 4 : index
    %c0_61 = arith.constant 0 : index
    %c0_62 = arith.constant 0 : index
    %152 = vector.load %arg4[%c0_60, %c4, %c0_61, %c0_62] : memref<1x8x4x32xbf16, #tpu.memory_space<vmem>>, vector<1x1x4x32xbf16>
    %153 = vector.shape_cast %152 : vector<1x1x4x32xbf16> to vector<4x32xbf16>
    %cst_63 = arith.constant dense<0.000000e+00> : vector<16x32xf32>
    %154 = tpu.matmul %151, %153, %cst_63 {dimension_numbers = #tpu.dot_dimension_numbers<[1], [0], [0], [1], [0, 0, 1, 1], [], []>} : vector<16x4xbf16>, vector<4x32xbf16>, vector<16x32xf32> -> vector<16x32xf32>
    %155 = arith.addf %149, %154 : vector<16x32xf32>
    %c0_64 = arith.constant 0 : index
    %c0_65 = arith.constant 0 : index
    %156 = vector.load %arg8[%c0_64, %c0_65] : memref<16x32xf32, #tpu.memory_space<vmem>>, vector<16x32xf32>
    tpu.vector_store %arg8[%c0_64, %c0_65], %155 {strides = array<i32>} : memref<16x32xf32, #tpu.memory_space<vmem>>, vector<16x32xf32>,
    %157 = vector.extract_strided_slice %6 {offsets = [0, 20], sizes = [16, 4], strides = [1, 1]} : vector<16x96xf32> to vector<16x4xf32>
    %158 = vector.shape_cast %157 : vector<16x4xf32> to vector<1x16x4xf32>
    %159 = arith.truncf %158 : vector<1x16x4xf32> to vector<1x16x4xbf16>
    %160 = vector.extract_strided_slice %6 {offsets = [0, 52], sizes = [16, 4], strides = [1, 1]} : vector<16x96xf32> to vector<16x4xf32>
    %161 = vector.shape_cast %160 : vector<16x4xf32> to vector<1x16x4xf32>
    %162 = arith.truncf %161 : vector<1x16x4xf32> to vector<1x16x4xbf16>
    %163 = vector.extract_strided_slice %6 {offsets = [0, 84], sizes = [16, 4], strides = [1, 1]} : vector<16x96xf32> to vector<16x4xf32>
    %164 = vector.shape_cast %163 : vector<16x4xf32> to vector<1x16x4xf32>
    %165 = arith.truncf %164 : vector<1x16x4xf32> to vector<1x16x4xbf16>
    "tpu.trace_start"() <{level = 10 : i32, message = "bqd,bkd->bqk"}> : () -> ()
    %cst_66 = arith.constant dense<0.000000e+00> : vector<1x16x16xf32>
    %166 = tpu.matmul %159, %162, %cst_66 {dimension_numbers = #tpu.dot_dimension_numbers<[2], [2], [1], [1], [0, 0, 0, 1, 1, 1], [0], [0]>} : vector<1x16x4xbf16>, vector<1x16x4xbf16>, vector<1x16x16xf32> -> vector<1x16x16xf32>
    "tpu.trace_stop"() : () -> ()
    %cst_67 = arith.constant dense<0xFF800000> : vector<1x16xf32>
    %167 = vector.multi_reduction <maximumf>, %166, %cst_67 [2] : vector<1x16x16xf32> to vector<1x16xf32>
    %168 = vector.shape_cast %167 : vector<1x16xf32> to vector<1x16x1xf32>
    %169 = vector.broadcast %168 : vector<1x16x1xf32> to vector<1x16x16xf32>
    %170 = arith.subf %166, %169 : vector<1x16x16xf32>
    %171 = math.exp %170 : vector<1x16x16xf32>
    %cst_68 = arith.constant dense<0.000000e+00> : vector<1x16xf32>
    %172 = vector.multi_reduction <add>, %171, %cst_68 [2] : vector<1x16x16xf32> to vector<1x16xf32>
    %173 = vector.shape_cast %172 : vector<1x16xf32> to vector<1x16x1xf32>
    %174 = arith.truncf %171 : vector<1x16x16xf32> to vector<1x16x16xbf16>
    "tpu.trace_start"() <{level = 10 : i32, message = "bqk,bkd->bqd"}> : () -> ()
    %cst_69 = arith.constant dense<0.000000e+00> : vector<1x16x4xf32>
    %175 = tpu.matmul %174, %165, %cst_69 {dimension_numbers = #tpu.dot_dimension_numbers<[2], [1], [1], [2], [0, 0, 0, 1, 1, 2], [0], [0]>} : vector<1x16x16xbf16>, vector<1x16x4xbf16>, vector<1x16x4xf32> -> vector<1x16x4xf32>
    "tpu.trace_stop"() : () -> ()
    %176 = tpu.reciprocal %173 {approx = true} : vector<1x16x1xf32> -> vector<1x16x1xf32>
    %177 = vector.broadcast %176 : vector<1x16x1xf32> to vector<1x16x4xf32>
    %178 = arith.mulf %175, %177 : vector<1x16x4xf32>
    %c0_70 = arith.constant 0 : index
    %c0_71 = arith.constant 0 : index
    %179 = vector.load %arg8[%c0_70, %c0_71] : memref<16x32xf32, #tpu.memory_space<vmem>>, vector<16x32xf32>
    %180 = vector.shape_cast %178 : vector<1x16x4xf32> to vector<16x4xf32>
    %181 = arith.truncf %180 : vector<16x4xf32> to vector<16x4xbf16>
    %c0_72 = arith.constant 0 : index
    %c5 = arith.constant 5 : index
    %c0_73 = arith.constant 0 : index
    %c0_74 = arith.constant 0 : index
    %182 = vector.load %arg4[%c0_72, %c5, %c0_73, %c0_74] : memref<1x8x4x32xbf16, #tpu.memory_space<vmem>>, vector<1x1x4x32xbf16>
    %183 = vector.shape_cast %182 : vector<1x1x4x32xbf16> to vector<4x32xbf16>
    %cst_75 = arith.constant dense<0.000000e+00> : vector<16x32xf32>
    %184 = tpu.matmul %181, %183, %cst_75 {dimension_numbers = #tpu.dot_dimension_numbers<[1], [0], [0], [1], [0, 0, 1, 1], [], []>} : vector<16x4xbf16>, vector<4x32xbf16>, vector<16x32xf32> -> vector<16x32xf32>
    %185 = arith.addf %179, %184 : vector<16x32xf32>
    %c0_76 = arith.constant 0 : index
    %c0_77 = arith.constant 0 : index
    %186 = vector.load %arg8[%c0_76, %c0_77] : memref<16x32xf32, #tpu.memory_space<vmem>>, vector<16x32xf32>
    tpu.vector_store %arg8[%c0_76, %c0_77], %185 {strides = array<i32>} : memref<16x32xf32, #tpu.memory_space<vmem>>, vector<16x32xf32>,
    %187 = vector.extract_strided_slice %6 {offsets = [0, 24], sizes = [16, 4], strides = [1, 1]} : vector<16x96xf32> to vector<16x4xf32>
    %188 = vector.shape_cast %187 : vector<16x4xf32> to vector<1x16x4xf32>
    %189 = arith.truncf %188 : vector<1x16x4xf32> to vector<1x16x4xbf16>
    %190 = vector.extract_strided_slice %6 {offsets = [0, 56], sizes = [16, 4], strides = [1, 1]} : vector<16x96xf32> to vector<16x4xf32>
    %191 = vector.shape_cast %190 : vector<16x4xf32> to vector<1x16x4xf32>
    %192 = arith.truncf %191 : vector<1x16x4xf32> to vector<1x16x4xbf16>
    %193 = vector.extract_strided_slice %6 {offsets = [0, 88], sizes = [16, 4], strides = [1, 1]} : vector<16x96xf32> to vector<16x4xf32>
    %194 = vector.shape_cast %193 : vector<16x4xf32> to vector<1x16x4xf32>
    %195 = arith.truncf %194 : vector<1x16x4xf32> to vector<1x16x4xbf16>
    "tpu.trace_start"() <{level = 10 : i32, message = "bqd,bkd->bqk"}> : () -> ()
    %cst_78 = arith.constant dense<0.000000e+00> : vector<1x16x16xf32>
    %196 = tpu.matmul %189, %192, %cst_78 {dimension_numbers = #tpu.dot_dimension_numbers<[2], [2], [1], [1], [0, 0, 0, 1, 1, 1], [0], [0]>} : vector<1x16x4xbf16>, vector<1x16x4xbf16>, vector<1x16x16xf32> -> vector<1x16x16xf32>
    "tpu.trace_stop"() : () -> ()
    %cst_79 = arith.constant dense<0xFF800000> : vector<1x16xf32>
    %197 = vector.multi_reduction <maximumf>, %196, %cst_79 [2] : vector<1x16x16xf32> to vector<1x16xf32>
    %198 = vector.shape_cast %197 : vector<1x16xf32> to vector<1x16x1xf32>
    %199 = vector.broadcast %198 : vector<1x16x1xf32> to vector<1x16x16xf32>
    %200 = arith.subf %196, %199 : vector<1x16x16xf32>
    %201 = math.exp %200 : vector<1x16x16xf32>
    %cst_80 = arith.constant dense<0.000000e+00> : vector<1x16xf32>
    %202 = vector.multi_reduction <add>, %201, %cst_80 [2] : vector<1x16x16xf32> to vector<1x16xf32>
    %203 = vector.shape_cast %202 : vector<1x16xf32> to vector<1x16x1xf32>
    %204 = arith.truncf %201 : vector<1x16x16xf32> to vector<1x16x16xbf16>
    "tpu.trace_start"() <{level = 10 : i32, message = "bqk,bkd->bqd"}> : () -> ()
    %cst_81 = arith.constant dense<0.000000e+00> : vector<1x16x4xf32>
    %205 = tpu.matmul %204, %195, %cst_81 {dimension_numbers = #tpu.dot_dimension_numbers<[2], [1], [1], [2], [0, 0, 0, 1, 1, 2], [0], [0]>} : vector<1x16x16xbf16>, vector<1x16x4xbf16>, vector<1x16x4xf32> -> vector<1x16x4xf32>
    "tpu.trace_stop"() : () -> ()
    %206 = tpu.reciprocal %203 {approx = true} : vector<1x16x1xf32> -> vector<1x16x1xf32>
    %207 = vector.broadcast %206 : vector<1x16x1xf32> to vector<1x16x4xf32>
    %208 = arith.mulf %205, %207 : vector<1x16x4xf32>
    %c0_82 = arith.constant 0 : index
    %c0_83 = arith.constant 0 : index
    %209 = vector.load %arg8[%c0_82, %c0_83] : memref<16x32xf32, #tpu.memory_space<vmem>>, vector<16x32xf32>
    %210 = vector.shape_cast %208 : vector<1x16x4xf32> to vector<16x4xf32>
    %211 = arith.truncf %210 : vector<16x4xf32> to vector<16x4xbf16>
    %c0_84 = arith.constant 0 : index
    %c6 = arith.constant 6 : index
    %c0_85 = arith.constant 0 : index
    %c0_86 = arith.constant 0 : index
    %212 = vector.load %arg4[%c0_84, %c6, %c0_85, %c0_86] : memref<1x8x4x32xbf16, #tpu.memory_space<vmem>>, vector<1x1x4x32xbf16>
    %213 = vector.shape_cast %212 : vector<1x1x4x32xbf16> to vector<4x32xbf16>
    %cst_87 = arith.constant dense<0.000000e+00> : vector<16x32xf32>
    %214 = tpu.matmul %211, %213, %cst_87 {dimension_numbers = #tpu.dot_dimension_numbers<[1], [0], [0], [1], [0, 0, 1, 1], [], []>} : vector<16x4xbf16>, vector<4x32xbf16>, vector<16x32xf32> -> vector<16x32xf32>
    %215 = arith.addf %209, %214 : vector<16x32xf32>
    %c0_88 = arith.constant 0 : index
    %c0_89 = arith.constant 0 : index
    %216 = vector.load %arg8[%c0_88, %c0_89] : memref<16x32xf32, #tpu.memory_space<vmem>>, vector<16x32xf32>
    tpu.vector_store %arg8[%c0_88, %c0_89], %215 {strides = array<i32>} : memref<16x32xf32, #tpu.memory_space<vmem>>, vector<16x32xf32>,
    %217 = vector.extract_strided_slice %6 {offsets = [0, 28], sizes = [16, 4], strides = [1, 1]} : vector<16x96xf32> to vector<16x4xf32>
    %218 = vector.shape_cast %217 : vector<16x4xf32> to vector<1x16x4xf32>
    %219 = arith.truncf %218 : vector<1x16x4xf32> to vector<1x16x4xbf16>
    %220 = vector.extract_strided_slice %6 {offsets = [0, 60], sizes = [16, 4], strides = [1, 1]} : vector<16x96xf32> to vector<16x4xf32>
    %221 = vector.shape_cast %220 : vector<16x4xf32> to vector<1x16x4xf32>
    %222 = arith.truncf %221 : vector<1x16x4xf32> to vector<1x16x4xbf16>
    %223 = vector.extract_strided_slice %6 {offsets = [0, 92], sizes = [16, 4], strides = [1, 1]} : vector<16x96xf32> to vector<16x4xf32>
    %224 = vector.shape_cast %223 : vector<16x4xf32> to vector<1x16x4xf32>
    %225 = arith.truncf %224 : vector<1x16x4xf32> to vector<1x16x4xbf16>
    "tpu.trace_start"() <{level = 10 : i32, message = "bqd,bkd->bqk"}> : () -> ()
    %cst_90 = arith.constant dense<0.000000e+00> : vector<1x16x16xf32>
    %226 = tpu.matmul %219, %222, %cst_90 {dimension_numbers = #tpu.dot_dimension_numbers<[2], [2], [1], [1], [0, 0, 0, 1, 1, 1], [0], [0]>} : vector<1x16x4xbf16>, vector<1x16x4xbf16>, vector<1x16x16xf32> -> vector<1x16x16xf32>
    "tpu.trace_stop"() : () -> ()
    %cst_91 = arith.constant dense<0xFF800000> : vector<1x16xf32>
    %227 = vector.multi_reduction <maximumf>, %226, %cst_91 [2] : vector<1x16x16xf32> to vector<1x16xf32>
    %228 = vector.shape_cast %227 : vector<1x16xf32> to vector<1x16x1xf32>
    %229 = vector.broadcast %228 : vector<1x16x1xf32> to vector<1x16x16xf32>
    %230 = arith.subf %226, %229 : vector<1x16x16xf32>
    %231 = math.exp %230 : vector<1x16x16xf32>
    %cst_92 = arith.constant dense<0.000000e+00> : vector<1x16xf32>
    %232 = vector.multi_reduction <add>, %231, %cst_92 [2] : vector<1x16x16xf32> to vector<1x16xf32>
    %233 = vector.shape_cast %232 : vector<1x16xf32> to vector<1x16x1xf32>
    %234 = arith.truncf %231 : vector<1x16x16xf32> to vector<1x16x16xbf16>
    "tpu.trace_start"() <{level = 10 : i32, message = "bqk,bkd->bqd"}> : () -> ()
    %cst_93 = arith.constant dense<0.000000e+00> : vector<1x16x4xf32>
    %235 = tpu.matmul %234, %225, %cst_93 {dimension_numbers = #tpu.dot_dimension_numbers<[2], [1], [1], [2], [0, 0, 0, 1, 1, 2], [0], [0]>} : vector<1x16x16xbf16>, vector<1x16x4xbf16>, vector<1x16x4xf32> -> vector<1x16x4xf32>
    "tpu.trace_stop"() : () -> ()
    %236 = tpu.reciprocal %233 {approx = true} : vector<1x16x1xf32> -> vector<1x16x1xf32>
    %237 = vector.broadcast %236 : vector<1x16x1xf32> to vector<1x16x4xf32>
    %238 = arith.mulf %235, %237 : vector<1x16x4xf32>
    %c0_94 = arith.constant 0 : index
    %c0_95 = arith.constant 0 : index
    %239 = vector.load %arg8[%c0_94, %c0_95] : memref<16x32xf32, #tpu.memory_space<vmem>>, vector<16x32xf32>
    %240 = vector.shape_cast %238 : vector<1x16x4xf32> to vector<16x4xf32>
    %241 = arith.truncf %240 : vector<16x4xf32> to vector<16x4xbf16>
    %c0_96 = arith.constant 0 : index
    %c7 = arith.constant 7 : index
    %c0_97 = arith.constant 0 : index
    %c0_98 = arith.constant 0 : index
    %242 = vector.load %arg4[%c0_96, %c7, %c0_97, %c0_98] : memref<1x8x4x32xbf16, #tpu.memory_space<vmem>>, vector<1x1x4x32xbf16>
    %243 = vector.shape_cast %242 : vector<1x1x4x32xbf16> to vector<4x32xbf16>
    %cst_99 = arith.constant dense<0.000000e+00> : vector<16x32xf32>
    %244 = tpu.matmul %241, %243, %cst_99 {dimension_numbers = #tpu.dot_dimension_numbers<[1], [0], [0], [1], [0, 0, 1, 1], [], []>} : vector<16x4xbf16>, vector<4x32xbf16>, vector<16x32xf32> -> vector<16x32xf32>
    %245 = arith.addf %239, %244 : vector<16x32xf32>
    %c0_100 = arith.constant 0 : index
    %c0_101 = arith.constant 0 : index
    %246 = vector.load %arg8[%c0_100, %c0_101] : memref<16x32xf32, #tpu.memory_space<vmem>>, vector<16x32xf32>
    tpu.vector_store %arg8[%c0_100, %c0_101], %245 {strides = array<i32>} : memref<16x32xf32, #tpu.memory_space<vmem>>, vector<16x32xf32>,
    %c0_i32_102 = arith.constant 0 : i32
    %247 = arith.cmpi eq, %arg1, %c0_i32_102 : i32
    %248 = arith.extui %247 : i1 to i32
    %c0_i32_103 = arith.constant 0 : i32
    %249 = arith.cmpi ne, %248, %c0_i32_103 : i32
    scf.if %249 {
      %c0_104 = arith.constant 0 : index
      %c0_105 = arith.constant 0 : index
      %250 = vector.load %arg8[%c0_104, %c0_105] : memref<16x32xf32, #tpu.memory_space<vmem>>, vector<16x32xf32>
      %251 = vector.shape_cast %250 : vector<16x32xf32> to vector<1x16x32xf32>
      %c0_106 = arith.constant 0 : index
      %c0_107 = arith.constant 0 : index
      %c0_108 = arith.constant 0 : index
      %252 = vector.load %arg6[%c0_106, %c0_107, %c0_108] : memref<1x16x32xf32, #tpu.memory_space<vmem>>, vector<1x16x32xf32>
      tpu.vector_store %arg6[%c0_106, %c0_107, %c0_108], %251 {strides = array<i32>} : memref<1x16x32xf32, #tpu.memory_space<vmem>>, vector<1x16x32xf32>,
    } else {
    }
    return
  }
  func.func @transform_0(%arg0: i32, %arg1: i32) -> (i32, i32, i32) {
    %c0_i32 = arith.constant 0 : i32
    %c0_i32_0 = arith.constant 0 : i32
    %c0_i32_1 = arith.constant 0 : i32
    return %arg0, %c0_i32, %c0_i32_0 : i32, i32, i32
  }
  func.func @transform_1(%arg0: i32, %arg1: i32) -> (i32, i32, i32) {
    %c0_i32 = arith.constant 0 : i32
    %c0_i32_0 = arith.constant 0 : i32
    %c0_i32_1 = arith.constant 0 : i32
    return %arg1, %c0_i32, %c0_i32_0 : i32, i32, i32
  }
  func.func @transform_2(%arg0: i32, %arg1: i32) -> (i32, i32, i32, i32) {
    %c0_i32 = arith.constant 0 : i32
    %c0_i32_0 = arith.constant 0 : i32
    %c0_i32_1 = arith.constant 0 : i32
    %c0_i32_2 = arith.constant 0 : i32
    return %arg1, %c0_i32, %c0_i32_0, %c0_i32_1 : i32, i32, i32, i32
  }
  func.func @transform_3(%arg0: i32, %arg1: i32) -> (i32, i32) {
    %c0_i32 = arith.constant 0 : i32
    %c0_i32_0 = arith.constant 0 : i32
    %c0_i32_1 = arith.constant 0 : i32
    return %c0_i32, %c0_i32_0 : i32, i32
  }
  func.func @transform_4(%arg0: i32, %arg1: i32) -> (i32, i32, i32) {
    %c0_i32 = arith.constant 0 : i32
    %c0_i32_0 = arith.constant 0 : i32
    %c0_i32_1 = arith.constant 0 : i32
    return %arg0, %c0_i32, %c0_i32_0 : i32, i32, i32
  }
}

</mosaic_0001>

<llo_original>
// kernel: tpu_custom_call.1
$region0: #{tpu_custom_call.1}
  #allocation0 [shape = 'u32[]', space=smem, size = 0x4, offset = 0x4, fixed_abs, tag = 'smem constant byte address 0x4 - core index']
  #allocation1 [shape = 'u32[144,128]{1,0:T(1,128)}', space=vmem, size = 0x12000, scoped, tag = 'internal scratch']
  #allocation2 [shape = 'bf16[16,32]{1,0:T(16,128)(2,1)}', space=vmem, size = 0x1000, scoped, tag = 'scratch operand']
  #allocation3 [shape = 'f32[16,32]{1,0:T(8,128)}', space=vmem, size = 0x2000, scoped, tag = 'scratch operand']
  %s0 = inlined_call_operand.hbm [shape: f32[2,16,32], index: 0, kind: input, shape index: {}]
  %s1 = inlined_call_operand.hbm [shape: bf16[1,32,96], index: 1, kind: input, shape index: {}]
  %s2 = inlined_call_operand.hbm [shape: bf16[1,8,4,32], index: 2, kind: input, shape index: {}]
  %s3 = inlined_call_operand.vmem [shape: f32[1,32], index: 3, kind: input, shape index: {}]
  %s4 = inlined_call_operand.hbm [shape: f32[2,16,32], index: 4, kind: output, shape index: {}]
  %s5 = sld [smem:[#allocation0]]
  $region69: #{tpu_custom_call.1} parent=0
    _
  %s7 = ssub.s32 1, %s5
  %s8 = scalar_select 0, %s7, %s5
  $region1: #{tpu_custom_call.1} parent=0
    #allocation4 [shape = 'u8[16384]{0}', space=vmem, size = 0x4000, scoped, tag = 'input window, operand 0']
    #allocation5 [shape = 's32[2]{0}', space=sflag, size = 0x8, scoped, tag = 'scoped memory for tpu_custom_call.1']
    #allocation6 [shape = 's32[2]{0}', space=sflag, size = 0x8, scoped, tag = 'scoped memory for tpu_custom_call.1']
    #allocation7 [shape = 'u8[8192]{0}', space=vmem, size = 0x2000, scoped, tag = 'input window, operand 1, single buffered']
    #allocation8 [shape = 's32[1]{0}', space=sflag, size = 0x4, scoped, tag = 'scoped memory for tpu_custom_call.1']
    #allocation9 [shape = 'u8[8192]{0}', space=vmem, size = 0x2000, scoped, tag = 'input window, operand 2, single buffered']
    #allocation10 [shape = 'u8[16384]{0}', space=vmem, size = 0x4000, scoped, tag = 'output window, operand 0']
    %9 = vsyncpa [#allocation5], 0
    %s10 = scalar_lea.sflag [#allocation5], 1
    %11 = vsyncpa %s10, 0
    %12 = vsyncpa [#allocation8], 0
    %13 = vsyncpa [#allocation6], 0
    %s14 = scalar_lea.sflag [#allocation6], 1
    %15 = vsyncpa %s14, 0
    loop: start=0, step=1, limit=4
    $region2: #{tpu_custom_call.1} parent=1 // loop_pre_header
      _
    $region3: #{tpu_custom_call.1} parent=1 // loop_header
      %s17 = sphi 0, %s21
      %p18 = scmp.ge.s32.totalorder %s17, 4
      %s24 = sphi 0, %s36
      %s25 = sphi 0, %s32
      %s26 = sphi 0, %s24
      %s27 = sphi 0, %s25
      %s28 = sphi 0, %s26
      %s29 = sphi 0, %s27
      %s39 = sphi 0, %s41
      %s42 = sphi 0, %s39
      %s43 = sphi 0, %s42
      %s59 = sphi 0, %s43
      %s65 = sphi 0, %s67
      %s68 = sphi 0, %s65
      %s69 = sphi 0, %s68
      %s85 = sphi 0, %s69
      %s91 = sphi 0, %s93
      %s94 = sphi 0, %s91
      %s95 = sphi 0, %s94
      %s111 = sphi 0, %s95
      %s115 = sphi 0, %s115
      %s117 = sphi 0, %s115
      %s118 = sphi 0, %s117
      %s132 = sphi 0, %s118
      %s138 = sphi 0, %s140
      %s141 = sphi 0, %s138
      %s142 = sphi 0, %s141
      %s158 = sphi 0, %s142
    $region4: #{tpu_custom_call.1} parent=1 // loop_header_branch
      %20 = sbr.rel (%p18) target = $region8
    $region5: #{tpu_custom_call.1} parent=1 // loop_body
      %s22 = ssub.s32 %s17, 1
      %s23 = ssub.s32 %s17, 2
      %s30 = sadd.s32 1, %s25
      %p31 = scmp.ge.s32.totalorder %s30, 1
      %s32 = scalar_select %p31, 0, %s30
      %s33 = sadd.s32 1, %s24
      %s34 = scalar_select %p31, %s33, %s24
      %p35 = scmp.ge.s32.totalorder %s34, 2
      %s36 = scalar_select %p35, 0, %s34
      %s37 = ssub.s32 %s24, %s36
      %p38 = scmp.eq.s32.totalorder %s37, 0
      %s40 = sadd.s32 %s39, 1
      %s41 = scalar_select %p38, %s39, %s40
      %p44 = pneg %p38
      %p45 = scmp.eq.s32.totalorder %s17, 1
      %p46 = por %p44, %p45
      %p47 = scmp.ne.s32.totalorder %s39, %s42
      %p48 = scmp.eq.s32.totalorder %s17, 0
      %p49 = por %p47, %p48
      %p50 = scmp.ne.s32.totalorder %s39, %s42
      %p51 = scmp.eq.s32.totalorder %s22, 1
      %p52 = por %p50, %p51
      %p53 = scmp.ne.s32.totalorder %s42, %s43
      %p54 = scmp.eq.s32.totalorder %s22, 0
      %p55 = por %p53, %p54
      %p56 = scmp.ne.s32.totalorder %s42, %s43
      %p57 = scmp.eq.s32.totalorder %s23, 1
      %p58 = por %p56, %p57
      %p60 = scmp.ne.s32.totalorder %s43, %s59
      %p61 = scmp.eq.s32.totalorder %s23, 0
      %p62 = por %p60, %p61
      %s63 = ssub.s32 %s25, %s32
      %p64 = scmp.eq.s32.totalorder %s63, 0
      %s66 = sadd.s32 %s65, 1
      %s67 = scalar_select %p64, %s65, %s66
      %p70 = pneg %p64
      %p71 = scmp.eq.s32.totalorder %s17, 1
      %p72 = por %p70, %p71
      %p73 = scmp.ne.s32.totalorder %s65, %s68
      %p74 = scmp.eq.s32.totalorder %s17, 0
      %p75 = por %p73, %p74
      %p76 = scmp.ne.s32.totalorder %s65, %s68
      %p77 = scmp.eq.s32.totalorder %s22, 1
      %p78 = por %p76, %p77
      %p79 = scmp.ne.s32.totalorder %s68, %s69
      %p80 = scmp.eq.s32.totalorder %s22, 0
      %p81 = por %p79, %p80
      %p82 = scmp.ne.s32.totalorder %s68, %s69
      %p83 = scmp.eq.s32.totalorder %s23, 1
      %p84 = por %p82, %p83
      %p86 = scmp.ne.s32.totalorder %s69, %s85
      %p87 = scmp.eq.s32.totalorder %s23, 0
      %p88 = por %p86, %p87
      %s89 = ssub.s32 %s25, %s32
      %p90 = scmp.eq.s32.totalorder %s89, 0
      %s92 = sadd.s32 %s91, 1
      %s93 = scalar_select %p90, %s91, %s92
      %p96 = pneg %p90
      %p97 = scmp.eq.s32.totalorder %s17, 1
      %p98 = por %p96, %p97
      %p99 = scmp.ne.s32.totalorder %s91, %s94
      %p100 = scmp.eq.s32.totalorder %s17, 0
      %p101 = por %p99, %p100
      %p102 = scmp.ne.s32.totalorder %s91, %s94
      %p103 = scmp.eq.s32.totalorder %s22, 1
      %p104 = por %p102, %p103
      %p105 = scmp.ne.s32.totalorder %s94, %s95
      %p106 = scmp.eq.s32.totalorder %s22, 0
      %p107 = por %p105, %p106
      %p108 = scmp.ne.s32.totalorder %s94, %s95
      %p109 = scmp.eq.s32.totalorder %s23, 1
      %p110 = por %p108, %p109
      %p112 = scmp.ne.s32.totalorder %s95, %s111
      %p113 = scmp.eq.s32.totalorder %s23, 0
      %p114 = por %p112, %p113
      %s116 = sadd.s32 %s115, 1
      %p119 = scmp.eq.s32.totalorder %s17, 1
      %p120 = scmp.ne.s32.totalorder %s115, %s117
      %p121 = scmp.eq.s32.totalorder %s17, 0
      %p122 = por %p120, %p121
      %p123 = scmp.ne.s32.totalorder %s115, %s117
      %p124 = scmp.eq.s32.totalorder %s22, 1
      %p125 = por %p123, %p124
      %p126 = scmp.ne.s32.totalorder %s117, %s118
      %p127 = scmp.eq.s32.totalorder %s22, 0
      %p128 = por %p126, %p127
      %p129 = scmp.ne.s32.totalorder %s117, %s118
      %p130 = scmp.eq.s32.totalorder %s23, 1
      %p131 = por %p129, %p130
      %p133 = scmp.ne.s32.totalorder %s118, %s132
      %p134 = scmp.eq.s32.totalorder %s23, 0
      %p135 = por %p133, %p134
      %s136 = ssub.s32 %s24, %s36
      %p137 = scmp.eq.s32.totalorder %s136, 0
      %s139 = sadd.s32 %s138, 1
      %s140 = scalar_select %p137, %s138, %s139
      %p143 = pneg %p137
      %p144 = scmp.eq.s32.totalorder %s17, 1
      %p145 = por %p143, %p144
      %p146 = scmp.ne.s32.totalorder %s138, %s141
      %p147 = scmp.eq.s32.totalorder %s17, 0
      %p148 = por %p146, %p147
      %p149 = scmp.ne.s32.totalorder %s138, %s141
      %p150 = scmp.eq.s32.totalorder %s22, 1
      %p151 = por %p149, %p150
      %p152 = scmp.ne.s32.totalorder %s141, %s142
      %p153 = scmp.eq.s32.totalorder %s22, 0
      %p154 = por %p152, %p153
      %p155 = scmp.ne.s32.totalorder %s141, %s142
      %p156 = scmp.eq.s32.totalorder %s23, 1
      %p157 = por %p155, %p156
      %p159 = scmp.ne.s32.totalorder %s142, %s158
      %p160 = scmp.eq.s32.totalorder %s23, 0
      %p161 = por %p159, %p160
      %p162 = scmp.le.s32.totalorder 1, %s17
      %p163 = scmp.lt.s32.totalorder %s17, 3
      %p164 = pnand %p162, %p163
      %p165 = pneg %p164
      // Predicated region
      $region9: #{tpu_custom_call.1} parent=5 // pred_check
        _
      $region10: #{tpu_custom_call.1} parent=5 // pred_check_branch
        %167 = sbr.rel (%p164) target = $region12
      $region11: #{tpu_custom_call.1} parent=5 // pred_region
        %s168 = ssub.s32 %s17, 1
        // Predicated region
        $region13: #{tpu_custom_call.1} parent=11 // pred_check
          %p169 = pneg %p81
        $region14: #{tpu_custom_call.1} parent=11 // pred_check_branch
          %171 = sbr.rel (%p169) target = $region16
        $region15: #{tpu_custom_call.1} parent=11 // pred_region
          %s173 = ssub.s32 256, 256
          %174 = vsyncadd [#allocation8], %s173
          %s175 = smul.addr %s27, 4
          %s176 = smul.addr %s175, 64
          %s177 = scalar_lea.hbm %s1, %s176
          %s178 = sshll.u32 [#allocation7], 4
          %s179 = int_to_ptr.vmem [resolvable:$true] %s178
          %184 = dma.hbm_to_vmem [thread:$0]  %s177, 256, %s179, [#allocation8], 64, 64, 4
        $region16: #{tpu_custom_call.1} parent=11 // pred_fallthru
          _
        // Predicated region
        $region17: #{tpu_custom_call.1} parent=11 // pred_check
          %p185 = pneg %p107
        $region18: #{tpu_custom_call.1} parent=11 // pred_check_branch
          %187 = sbr.rel (%p185) target = $region20
        $region19: #{tpu_custom_call.1} parent=11 // pred_region
          %s189 = ssub.s32 256, 256
          %190 = vsyncadd [#allocation8], %s189
          %s191 = smul.addr %s27, 8
          %s192 = smul.addr %s191, 32
          %s193 = scalar_lea.hbm %s2, %s192
          %s194 = sshll.u32 [#allocation9], 4
          %s195 = int_to_ptr.vmem [resolvable:$true] %s194
          %200 = dma.hbm_to_vmem [thread:$0]  %s193, 256, %s195, [#allocation8], 32, 32, 2
        $region20: #{tpu_custom_call.1} parent=11 // pred_fallthru
          _
        // Predicated region
        $region21: #{tpu_custom_call.1} parent=11 // pred_check
          %p201 = pneg %p128
        $region22: #{tpu_custom_call.1} parent=11 // pred_check_branch
          %203 = sbr.rel (%p201) target = $region24
        $region23: #{tpu_custom_call.1} parent=11 // pred_region
          _
        $region24: #{tpu_custom_call.1} parent=11 // pred_fallthru
          _
      $region12: #{tpu_custom_call.1} parent=5 // pred_fallthru
        _
      %p204 = scmp.lt.s32.totalorder %s17, 2
      // Predicated region
      $region25: #{tpu_custom_call.1} parent=5 // pred_check
        %p205 = pneg %p204
      $region26: #{tpu_custom_call.1} parent=5 // pred_check_branch
        %207 = sbr.rel (%p205) target = $region28
      $region27: #{tpu_custom_call.1} parent=5 // pred_region
        // Predicated region
        $region29: #{tpu_custom_call.1} parent=27 // pred_check
          %p208 = pneg %p49
        $region30: #{tpu_custom_call.1} parent=27 // pred_check_branch
          %210 = sbr.rel (%p208) target = $region32
        $region31: #{tpu_custom_call.1} parent=27 // pred_region
          %s211 = sand.u32 %s39, 1
          %s212 = scalar_lea.sflag [#allocation5], %s211
          %s213 = sand.u32 %s39, 1
          %s214 = smul.addr %s213, 16
          %s215 = scalar_lea.vmem [#allocation4], %s214
          %s217 = ssub.s32 256, 256
          %218 = vsyncadd %s212, %s217
          %s219 = smul.addr %s24, 2
          %s220 = smul.addr %s219, 128
          %s221 = scalar_lea.hbm %s0, %s220
          %s222 = sshll.u32 %s215, 4
          %s223 = int_to_ptr.vmem [resolvable:$true] %s222
          %228 = dma.hbm_to_vmem [thread:$0]  %s221, 256, %s223, %s212, 128, 128, 8
        $region32: #{tpu_custom_call.1} parent=27 // pred_fallthru
          _
      $region28: #{tpu_custom_call.1} parent=5 // pred_fallthru
        _
      %p229 = scmp.le.s32.totalorder 1, %s17
      %p230 = scmp.lt.s32.totalorder %s17, 3
      %p231 = pnand %p229, %p230
      %p232 = pneg %p231
      // Predicated region
      $region33: #{tpu_custom_call.1} parent=5 // pred_check
        _
      $region34: #{tpu_custom_call.1} parent=5 // pred_check_branch
        %234 = sbr.rel (%p231) target = $region36
      $region35: #{tpu_custom_call.1} parent=5 // pred_region
        %s235 = ssub.s32 %s17, 1
        %s236 = sand.u32 %s42, 1
        %s237 = scalar_lea.sflag [#allocation5], %s236
        %s238 = sand.u32 %s42, 1
        %s239 = smul.addr %s238, 16
        %s240 = scalar_lea.vmem [#allocation4], %s239
        // Predicated region
        $region37: #{tpu_custom_call.1} parent=35 // pred_check
          %p241 = pneg %p55
        $region38: #{tpu_custom_call.1} parent=35 // pred_check_branch
          %243 = sbr.rel (%p241) target = $region40
        $region39: #{tpu_custom_call.1} parent=35 // pred_region
          %244 = dma.done %s237, 256
        $region40: #{tpu_custom_call.1} parent=35 // pred_fallthru
          _
        // Predicated region
        $region41: #{tpu_custom_call.1} parent=35 // pred_check
          %p245 = pneg %p81
        $region42: #{tpu_custom_call.1} parent=35 // pred_check_branch
          %247 = sbr.rel (%p245) target = $region44
        $region43: #{tpu_custom_call.1} parent=35 // pred_region
          %248 = dma.done [#allocation8], 256
        $region44: #{tpu_custom_call.1} parent=35 // pred_fallthru
          _
        // Predicated region
        $region45: #{tpu_custom_call.1} parent=35 // pred_check
          %p249 = pneg %p107
        $region46: #{tpu_custom_call.1} parent=35 // pred_check_branch
          %251 = sbr.rel (%p249) target = $region48
        $region47: #{tpu_custom_call.1} parent=35 // pred_region
          %252 = dma.done [#allocation8], 256
        $region48: #{tpu_custom_call.1} parent=35 // pred_fallthru
          _
        %s253 = sand.u32 %s42, 1
        %s254 = scalar_lea.sflag [#allocation5], %s253
        %s255 = sand.u32 %s42, 1
        %s256 = smul.addr %s255, 16
        %s257 = scalar_lea.vmem [#allocation4], %s256
        %p258 = pneg %p55
        %p259 = pneg %p52
        %p260 = pneg %p81
        %p261 = pneg %p78
        %p262 = pneg %p107
        %p263 = pneg %p104
        %p264 = pneg %p128
        %p265 = pneg %p125
        %p266 = pneg %p154
        %p267 = pneg %p151
        %s268 = sand.u32 %s141, 1
        %s269 = scalar_lea.sflag [#allocation6], %s268
        %s270 = sand.u32 %s141, 1
        %s271 = smul.addr %s270, 16
        %s272 = scalar_lea.vmem [#allocation10], %s271
        %p274 = scmp.eq.s32.totalorder %s27, 0
        // Predicated region
        $region49: #{tpu_custom_call.1} parent=35 // pred_check
          %p275 = pneg %p274
        $region50: #{tpu_custom_call.1} parent=35 // pred_check_branch
          %277 = sbr.rel (%p275) target = $region52
        $region51: #{tpu_custom_call.1} parent=35 // pred_region
          %v278 = vld [vmem:[%s240] sm:$0xff]
          %v279 = vld [vmem:[%s240 + $0x8] sm:$0xff]
          %v280 = vpack.c.bf16 %v279, %v278
          %vm281 = vcmask 261120
          %282 = vst.msk [vmem:[#allocation2] sm:$0xff] %vm281, %v280
          %v283 = vld [vmem:[%s3] sm:$0x1]
          %v285 = vlaneseq
          %v286 = vshrl.u32 %v285, 7
          %v287 = vsub.s32 0, %v286
          %v288 = vrot.slane %v283, %v287
          %290 = vst.msk [vmem:[#allocation3] sm:$0xff] %vm281, %v288
          %291 = vst.msk [vmem:[#allocation3 + $0x8] sm:$0xff] %vm281, %v288
        $region52: #{tpu_custom_call.1} parent=35 // pred_fallthru
          _
        %v292 = vld [vmem:[#allocation2] sm:$0xff]
        %v293 = vld [vmem:[#allocation7] sm:$0xf]
        %v294 = vld [vmem:[#allocation7 + $0x4] sm:$0xf]
        %v295 = vld [vmem:[#allocation7 + $0x8] sm:$0xf]
        %v296 = vld [vmem:[#allocation7 + $0xc] sm:$0xf]
        %v301 = vunpack.c.l.b16 %v293
        %v302 = vunpack.c.l.b16 %v294
        %v303 = vunpack.c.l.b16 %v295
        %v304 = vunpack.c.l.b16 %v296
        %v305 = vpack.c.b16 %v302, %v301
        %v306 = vpack.c.b16 %v304, %v303
        %vm309 = vcmask 261120
        %v311 = vsel %vm309, %v292, 0
        %313 = vmatprep.subr.bf16.mxu0 0
        %314 = vmatpush1.bf16.msra.mxu0 %v305
        %315 = vmatprep.subr.bf16.mxu0 0
        %316 = vmatpush1.bf16.msra.mxu0 %v306
        %317 = vmatprep.subr.bf16.mxu0 0
        %318 = vmatpush1.bf16.msra.mxu0 0
        %319 = vmatprep.subr.bf16.mxu0 0
        %320 = vmatpush1.bf16.msra.mxu0 0
        %321 = vmatprep.subr.bf16.mxu0 0
        %322 = vmatpush1.bf16.msra.mxu0 0
        %323 = vmatprep.subr.bf16.mxu0 0
        %324 = vmatpush1.bf16.msra.mxu0 0
        %325 = vmatprep.subr.bf16.mxu0 0
        %326 = vmatpush1.bf16.msra.mxu0 0
        %327 = vmatprep.subr.bf16.mxu0 0
        %328 = vmatpush1.bf16.msra.mxu0 0
        %329 = vmatprep.subr.bf16.mxu0 0
        %330 = vmatpush1.bf16.msra.mxu0 0
        %331 = vmatprep.subr.bf16.mxu0 0
        %332 = vmatpush1.bf16.msra.mxu0 0
        %333 = vmatprep.subr.bf16.mxu0 0
        %334 = vmatpush1.bf16.msra.mxu0 0
        %335 = vmatprep.subr.bf16.mxu0 0
        %336 = vmatpush1.bf16.msra.mxu0 0
        %337 = vmatprep.subr.bf16.mxu0 0
        %338 = vmatpush1.bf16.msra.mxu0 0
        %339 = vmatprep.subr.bf16.mxu0 0
        %340 = vmatpush1.bf16.msra.mxu0 0
        %341 = vmatprep.subr.bf16.mxu0 0
        %342 = vmatpush1.bf16.msra.mxu0 0
        %343 = vmatprep.subr.bf16.mxu0 0
        %344 = vmatpush1.bf16.msra.mxu0 0
        %345 = vmatprep.mubr.bf16.mxu0 0
        %346 = vmatmul.mubr.bf16.gmra.mrb[0].mxu0 %v311
        %v347 = vpop.f32.mrb[0].mxu0
        %v348 = vadd.f32 0.0, %v347
        %v349 = vpop.f32.mrb[0].mxu0
        %v350 = vpop.f32.mrb[0].mxu0
        %v351 = vadd.f32 0.0, %v350
        %v352 = vpop.f32.mrb[0].mxu0
        %353 = vdwg.mxu0
        %v354 = vpack.c.bf16 %v351, %v348
        %356 = vrot.lane.b32.xlu0 %v354, 96
        %v357 = vpop.permute.xlu0 %356
        %vm358 = vcmask 31744
        %v360 = vsel %vm358, %v354, 0
        %v363 = vsel %vm358, %v357, 0
        %365 = vmatprep.subr.bf16.mxu0 0
        %366 = vmatpush1.bf16.xpose.msra.mxu0 %v363
        %367 = vmatprep.subr.bf16.mxu0 0
        %368 = vmatpush1.bf16.xpose.msra.mxu0 0
        %369 = vmatprep.subr.bf16.mxu0 0
        %370 = vmatpush1.bf16.xpose.msra.mxu0 0
        %371 = vmatprep.subr.bf16.mxu0 0
        %372 = vmatpush1.bf16.xpose.msra.mxu0 0
        %373 = vmatprep.subr.bf16.mxu0 0
        %374 = vmatpush1.bf16.xpose.msra.mxu0 0
        %375 = vmatprep.subr.bf16.mxu0 0
        %376 = vmatpush1.bf16.xpose.msra.mxu0 0
        %377 = vmatprep.subr.bf16.mxu0 0
        %378 = vmatpush1.bf16.xpose.msra.mxu0 0
        %379 = vmatprep.subr.bf16.mxu0 0
        %380 = vmatpush1.bf16.xpose.msra.mxu0 0
        %381 = vmatprep.subr.bf16.mxu0 0
        %382 = vmatpush1.bf16.xpose.msra.mxu0 0
        %383 = vmatprep.subr.bf16.mxu0 0
        %384 = vmatpush1.bf16.xpose.msra.mxu0 0
        %385 = vmatprep.subr.bf16.mxu0 0
        %386 = vmatpush1.bf16.xpose.msra.mxu0 0
        %387 = vmatprep.subr.bf16.mxu0 0
        %388 = vmatpush1.bf16.xpose.msra.mxu0 0
        %389 = vmatprep.subr.bf16.mxu0 0
        %390 = vmatpush1.bf16.xpose.msra.mxu0 0
        %391 = vmatprep.subr.bf16.mxu0 0
        %392 = vmatpush1.bf16.xpose.msra.mxu0 0
        %393 = vmatprep.subr.bf16.mxu0 0
        %394 = vmatpush1.bf16.xpose.msra.mxu0 0
        %395 = vmatprep.subr.bf16.mxu0 0
        %396 = vmatpush1.bf16.xpose.msra.mxu0 0
        %397 = vmatprep.mubr.bf16.mxu0 0
        %398 = vmatmul.mubr.bf16.gmra.mrb[0].mxu0 %v360
        %v399 = vpop.f32.mrb[0].mxu0
        %v400 = vadd.f32 0.0, %v399
        %v401 = vpop.f32.mrb[0].mxu0
        %v402 = vpop.f32.mrb[0].mxu0
        %v403 = vadd.f32 0.0, %v402
        %v404 = vpop.f32.mrb[0].mxu0
        %405 = vdwg.mxu0
        %vm406 = vcmask 130048
        %v407 = vsel %vm406, %v400, -inf
        %408 = vmax.xlane.f32.xlu0 %v407
        %v409 = vpop.xlane.xlu0 %408
        %v410 = vsel %vm406, %v403, -inf
        %411 = vmax.xlane.f32.xlu0 %v410
        %v412 = vpop.xlane.xlu0 %411
        %v413 = vsub.f32 %v400, %v409
        %v414 = vsub.f32 %v403, %v412
        %v415 = vmul.f32 %v413, 1.442695
        %v416 = vpow.pop %v415
        %v417 = vmul.f32 %v414, 1.442695
        %v418 = vpow.pop %v417
        %v419 = vsel %vm406, %v416, 0.0
        %420 = vadd.xlane.f32.xlu0 %v419
        %v421 = vpop.xlane.xlu0 %420
        %v422 = vsel %vm406, %v418, 0.0
        %423 = vadd.xlane.f32.xlu0 %v422
        %v424 = vpop.xlane.xlu0 %423
        %v425 = vpack.c.bf16 %v418, %v416
        %426 = vrot.lane.b32.xlu0 %v354, 64
        %v427 = vpop.permute.xlu0 %426
        %v430 = vsel %vm406, %v425, 0
        %432 = vmatprep.subr.bf16.mxu0 0
        %433 = vmatpush1.bf16.msra.mxu0 %v427
        %434 = vmatprep.subr.bf16.mxu0 0
        %435 = vmatpush1.bf16.msra.mxu0 0
        %436 = vmatprep.subr.bf16.mxu0 0
        %437 = vmatpush1.bf16.msra.mxu0 0
        %438 = vmatprep.subr.bf16.mxu0 0
        %439 = vmatpush1.bf16.msra.mxu0 0
        %440 = vmatprep.subr.bf16.mxu0 0
        %441 = vmatpush1.bf16.msra.mxu0 0
        %442 = vmatprep.subr.bf16.mxu0 0
        %443 = vmatpush1.bf16.msra.mxu0 0
        %444 = vmatprep.subr.bf16.mxu0 0
        %445 = vmatpush1.bf16.msra.mxu0 0
        %446 = vmatprep.subr.bf16.mxu0 0
        %447 = vmatpush1.bf16.msra.mxu0 0
        %448 = vmatprep.subr.bf16.mxu0 0
        %449 = vmatpush1.bf16.msra.mxu0 0
        %450 = vmatprep.subr.bf16.mxu0 0
        %451 = vmatpush1.bf16.msra.mxu0 0
        %452 = vmatprep.subr.bf16.mxu0 0
        %453 = vmatpush1.bf16.msra.mxu0 0
        %454 = vmatprep.subr.bf16.mxu0 0
        %455 = vmatpush1.bf16.msra.mxu0 0
        %456 = vmatprep.subr.bf16.mxu0 0
        %457 = vmatpush1.bf16.msra.mxu0 0
        %458 = vmatprep.subr.bf16.mxu0 0
        %459 = vmatpush1.bf16.msra.mxu0 0
        %460 = vmatprep.subr.bf16.mxu0 0
        %461 = vmatpush1.bf16.msra.mxu0 0
        %462 = vmatprep.subr.bf16.mxu0 0
        %463 = vmatpush1.bf16.msra.mxu0 0
        %464 = vmatprep.mubr.bf16.mxu0 0
        %465 = vmatmul.mubr.bf16.gmra.mrb[0].mxu0 %v430
        %v466 = vpop.f32.mrb[0].mxu0
        %v467 = vadd.f32 0.0, %v466
        %v468 = vpop.f32.mrb[0].mxu0
        %v469 = vpop.f32.mrb[0].mxu0
        %v470 = vadd.f32 0.0, %v469
        %v471 = vpop.f32.mrb[0].mxu0
        %472 = vdwg.mxu0
        %v473 = vrcp.pop %v421
        %v474 = vrcp.pop %v424
        %v475 = vmul.f32 %v467, %v473
        %v476 = vmul.f32 %v470, %v474
        %v477 = vld [vmem:[#allocation3] sm:$0xff]
        %v478 = vld [vmem:[#allocation3 + $0x8] sm:$0xff]
        %v479 = vpack.c.bf16 %v476, %v475
        %v480 = vld [vmem:[#allocation9] sm:$0x3]
        %v482 = vsel %vm358, %v479, 0
        %vm484 = vcmask 1041408
        %v486 = vsel %vm484, %v480, 0
        %488 = vmatprep.subr.bf16.mxu0 0
        %489 = vmatpush1.bf16.msra.mxu0 %v486
        %490 = vmatprep.subr.bf16.mxu0 0
        %491 = vmatpush1.bf16.msra.mxu0 0
        %492 = vmatprep.subr.bf16.mxu0 0
        %493 = vmatpush1.bf16.msra.mxu0 0
        %494 = vmatprep.subr.bf16.mxu0 0
        %495 = vmatpush1.bf16.msra.mxu0 0
        %496 = vmatprep.subr.bf16.mxu0 0
        %497 = vmatpush1.bf16.msra.mxu0 0
        %498 = vmatprep.subr.bf16.mxu0 0
        %499 = vmatpush1.bf16.msra.mxu0 0
        %500 = vmatprep.subr.bf16.mxu0 0
        %501 = vmatpush1.bf16.msra.mxu0 0
        %502 = vmatprep.subr.bf16.mxu0 0
        %503 = vmatpush1.bf16.msra.mxu0 0
        %504 = vmatprep.subr.bf16.mxu0 0
        %505 = vmatpush1.bf16.msra.mxu0 0
        %506 = vmatprep.subr.bf16.mxu0 0
        %507 = vmatpush1.bf16.msra.mxu0 0
        %508 = vmatprep.subr.bf16.mxu0 0
        %509 = vmatpush1.bf16.msra.mxu0 0
        %510 = vmatprep.subr.bf16.mxu0 0
        %511 = vmatpush1.bf16.msra.mxu0 0
        %512 = vmatprep.subr.bf16.mxu0 0
        %513 = vmatpush1.bf16.msra.mxu0 0
        %514 = vmatprep.subr.bf16.mxu0 0
        %515 = vmatpush1.bf16.msra.mxu0 0
        %516 = vmatprep.subr.bf16.mxu0 0
        %517 = vmatpush1.bf16.msra.mxu0 0
        %518 = vmatprep.subr.bf16.mxu0 0
        %519 = vmatpush1.bf16.msra.mxu0 0
        %520 = vmatprep.mubr.bf16.mxu0 0
        %521 = vmatmul.mubr.bf16.gmra.mrb[0].mxu0 %v482
        %v522 = vpop.f32.mrb[0].mxu0
        %v523 = vadd.f32 0.0, %v522
        %v524 = vpop.f32.mrb[0].mxu0
        %v525 = vpop.f32.mrb[0].mxu0
        %v526 = vadd.f32 0.0, %v525
        %v527 = vpop.f32.mrb[0].mxu0
        %528 = vdwg.mxu0
        %v529 = vadd.f32 %v477, %v523
        %v530 = vadd.f32 %v478, %v526
        %531 = vst.msk [vmem:[#allocation3] sm:$0xff] %vm309, %v529
        %532 = vst.msk [vmem:[#allocation3 + $0x8] sm:$0xff] %vm309, %v530
        %533 = vrot.lane.b32.xlu0 %v354, 124
        %v534 = vpop.permute.xlu0 %533
        %535 = vrot.lane.b32.xlu0 %v354, 92
        %v536 = vpop.permute.xlu0 %535
        %v538 = vsel %vm358, %v534, 0
        %v541 = vsel %vm358, %v536, 0
        %543 = vmatprep.subr.bf16.mxu0 0
        %544 = vmatpush1.bf16.xpose.msra.mxu0 %v541
        %545 = vmatprep.subr.bf16.mxu0 0
        %546 = vmatpush1.bf16.xpose.msra.mxu0 0
        %547 = vmatprep.subr.bf16.mxu0 0
        %548 = vmatpush1.bf16.xpose.msra.mxu0 0
        %549 = vmatprep.subr.bf16.mxu0 0
        %550 = vmatpush1.bf16.xpose.msra.mxu0 0
        %551 = vmatprep.subr.bf16.mxu0 0
        %552 = vmatpush1.bf16.xpose.msra.mxu0 0
        %553 = vmatprep.subr.bf16.mxu0 0
        %554 = vmatpush1.bf16.xpose.msra.mxu0 0
        %555 = vmatprep.subr.bf16.mxu0 0
        %556 = vmatpush1.bf16.xpose.msra.mxu0 0
        %557 = vmatprep.subr.bf16.mxu0 0
        %558 = vmatpush1.bf16.xpose.msra.mxu0 0
        %559 = vmatprep.subr.bf16.mxu0 0
        %560 = vmatpush1.bf16.xpose.msra.mxu0 0
        %561 = vmatprep.subr.bf16.mxu0 0
        %562 = vmatpush1.bf16.xpose.msra.mxu0 0
        %563 = vmatprep.subr.bf16.mxu0 0
        %564 = vmatpush1.bf16.xpose.msra.mxu0 0
        %565 = vmatprep.subr.bf16.mxu0 0
        %566 = vmatpush1.bf16.xpose.msra.mxu0 0
        %567 = vmatprep.subr.bf16.mxu0 0
        %568 = vmatpush1.bf16.xpose.msra.mxu0 0
        %569 = vmatprep.subr.bf16.mxu0 0
        %570 = vmatpush1.bf16.xpose.msra.mxu0 0
        %571 = vmatprep.subr.bf16.mxu0 0
        %572 = vmatpush1.bf16.xpose.msra.mxu0 0
        %573 = vmatprep.subr.bf16.mxu0 0
        %574 = vmatpush1.bf16.xpose.msra.mxu0 0
        %575 = vmatprep.mubr.bf16.mxu0 0
        %576 = vmatmul.mubr.bf16.gmra.mrb[0].mxu0 %v538
        %v577 = vpop.f32.mrb[0].mxu0
        %v578 = vadd.f32 0.0, %v577
        %v579 = vpop.f32.mrb[0].mxu0
        %v580 = vpop.f32.mrb[0].mxu0
        %v581 = vadd.f32 0.0, %v580
        %v582 = vpop.f32.mrb[0].mxu0
        %583 = vdwg.mxu0
        %v584 = vsel %vm406, %v578, -inf
        %585 = vmax.xlane.f32.xlu0 %v584
        %v586 = vpop.xlane.xlu0 %585
        %v587 = vsel %vm406, %v581, -inf
        %588 = vmax.xlane.f32.xlu0 %v587
        %v589 = vpop.xlane.xlu0 %588
        %v590 = vsub.f32 %v578, %v586
        %v591 = vsub.f32 %v581, %v589
        %v592 = vmul.f32 %v590, 1.442695
        %v593 = vpow.pop %v592
        %v594 = vmul.f32 %v591, 1.442695
        %v595 = vpow.pop %v594
        %v596 = vsel %vm406, %v593, 0.0
        %597 = vadd.xlane.f32.xlu0 %v596
        %v598 = vpop.xlane.xlu0 %597
        %v599 = vsel %vm406, %v595, 0.0
        %600 = vadd.xlane.f32.xlu0 %v599
        %v601 = vpop.xlane.xlu0 %600
        %v602 = vpack.c.bf16 %v595, %v593
        %603 = vrot.lane.b32.xlu0 %v354, 60
        %v604 = vpop.permute.xlu0 %603
        %v607 = vsel %vm406, %v602, 0
        %609 = vmatprep.subr.bf16.mxu0 0
        %610 = vmatpush1.bf16.msra.mxu0 %v604
        %611 = vmatprep.subr.bf16.mxu0 0
        %612 = vmatpush1.bf16.msra.mxu0 0
        %613 = vmatprep.subr.bf16.mxu0 0
        %614 = vmatpush1.bf16.msra.mxu0 0
        %615 = vmatprep.subr.bf16.mxu0 0
        %616 = vmatpush1.bf16.msra.mxu0 0
        %617 = vmatprep.subr.bf16.mxu0 0
        %618 = vmatpush1.bf16.msra.mxu0 0
        %619 = vmatprep.subr.bf16.mxu0 0
        %620 = vmatpush1.bf16.msra.mxu0 0
        %621 = vmatprep.subr.bf16.mxu0 0
        %622 = vmatpush1.bf16.msra.mxu0 0
        %623 = vmatprep.subr.bf16.mxu0 0
        %624 = vmatpush1.bf16.msra.mxu0 0
        %625 = vmatprep.subr.bf16.mxu0 0
        %626 = vmatpush1.bf16.msra.mxu0 0
        %627 = vmatprep.subr.bf16.mxu0 0
        %628 = vmatpush1.bf16.msra.mxu0 0
        %629 = vmatprep.subr.bf16.mxu0 0
        %630 = vmatpush1.bf16.msra.mxu0 0
        %631 = vmatprep.subr.bf16.mxu0 0
        %632 = vmatpush1.bf16.msra.mxu0 0
        %633 = vmatprep.subr.bf16.mxu0 0
        %634 = vmatpush1.bf16.msra.mxu0 0
        %635 = vmatprep.subr.bf16.mxu0 0
        %636 = vmatpush1.bf16.msra.mxu0 0
        %637 = vmatprep.subr.bf16.mxu0 0
        %638 = vmatpush1.bf16.msra.mxu0 0
        %639 = vmatprep.subr.bf16.mxu0 0
        %640 = vmatpush1.bf16.msra.mxu0 0
        %641 = vmatprep.mubr.bf16.mxu0 0
        %642 = vmatmul.mubr.bf16.gmra.mrb[0].mxu0 %v607
        %v643 = vpop.f32.mrb[0].mxu0
        %v644 = vadd.f32 0.0, %v643
        %v645 = vpop.f32.mrb[0].mxu0
        %v646 = vpop.f32.mrb[0].mxu0
        %v647 = vadd.f32 0.0, %v646
        %v648 = vpop.f32.mrb[0].mxu0
        %649 = vdwg.mxu0
        %v650 = vrcp.pop %v598
        %v651 = vrcp.pop %v601
        %v652 = vmul.f32 %v644, %v650
        %v653 = vmul.f32 %v647, %v651
        %v654 = vld [vmem:[#allocation3] sm:$0xff]
        %v655 = vld [vmem:[#allocation3 + $0x8] sm:$0xff]
        %v656 = vpack.c.bf16 %v653, %v652
        %s657 = scalar_lea.vmem [#allocation9], 2
        %v658 = vld [vmem:[%s657] sm:$0x3]
        %v660 = vsel %vm358, %v656, 0
        %v663 = vsel %vm484, %v658, 0
        %665 = vmatprep.subr.bf16.mxu0 0
        %666 = vmatpush1.bf16.msra.mxu0 %v663
        %667 = vmatprep.subr.bf16.mxu0 0
        %668 = vmatpush1.bf16.msra.mxu0 0
        %669 = vmatprep.subr.bf16.mxu0 0
        %670 = vmatpush1.bf16.msra.mxu0 0
        %671 = vmatprep.subr.bf16.mxu0 0
        %672 = vmatpush1.bf16.msra.mxu0 0
        %673 = vmatprep.subr.bf16.mxu0 0
        %674 = vmatpush1.bf16.msra.mxu0 0
        %675 = vmatprep.subr.bf16.mxu0 0
        %676 = vmatpush1.bf16.msra.mxu0 0
        %677 = vmatprep.subr.bf16.mxu0 0
        %678 = vmatpush1.bf16.msra.mxu0 0
        %679 = vmatprep.subr.bf16.mxu0 0
        %680 = vmatpush1.bf16.msra.mxu0 0
        %681 = vmatprep.subr.bf16.mxu0 0
        %682 = vmatpush1.bf16.msra.mxu0 0
        %683 = vmatprep.subr.bf16.mxu0 0
        %684 = vmatpush1.bf16.msra.mxu0 0
        %685 = vmatprep.subr.bf16.mxu0 0
        %686 = vmatpush1.bf16.msra.mxu0 0
        %687 = vmatprep.subr.bf16.mxu0 0
        %688 = vmatpush1.bf16.msra.mxu0 0
        %689 = vmatprep.subr.bf16.mxu0 0
        %690 = vmatpush1.bf16.msra.mxu0 0
        %691 = vmatprep.subr.bf16.mxu0 0
        %692 = vmatpush1.bf16.msra.mxu0 0
        %693 = vmatprep.subr.bf16.mxu0 0
        %694 = vmatpush1.bf16.msra.mxu0 0
        %695 = vmatprep.subr.bf16.mxu0 0
        %696 = vmatpush1.bf16.msra.mxu0 0
        %697 = vmatprep.mubr.bf16.mxu0 0
        %698 = vmatmul.mubr.bf16.gmra.mrb[0].mxu0 %v660
        %v699 = vpop.f32.mrb[0].mxu0
        %v700 = vadd.f32 0.0, %v699
        %v701 = vpop.f32.mrb[0].mxu0
        %v702 = vpop.f32.mrb[0].mxu0
        %v703 = vadd.f32 0.0, %v702
        %v704 = vpop.f32.mrb[0].mxu0
        %705 = vdwg.mxu0
        %v706 = vadd.f32 %v654, %v700
        %v707 = vadd.f32 %v655, %v703
        %708 = vst.msk [vmem:[#allocation3] sm:$0xff] %vm309, %v706
        %709 = vst.msk [vmem:[#allocation3 + $0x8] sm:$0xff] %vm309, %v707
        %710 = vrot.lane.b32.xlu0 %v354, 120
        %v711 = vpop.permute.xlu0 %710
        %712 = vrot.lane.b32.xlu0 %v354, 88
        %v713 = vpop.permute.xlu0 %712
        %v715 = vsel %vm358, %v711, 0
        %v718 = vsel %vm358, %v713, 0
        %720 = vmatprep.subr.bf16.mxu0 0
        %721 = vmatpush1.bf16.xpose.msra.mxu0 %v718
        %722 = vmatprep.subr.bf16.mxu0 0
        %723 = vmatpush1.bf16.xpose.msra.mxu0 0
        %724 = vmatprep.subr.bf16.mxu0 0
        %725 = vmatpush1.bf16.xpose.msra.mxu0 0
        %726 = vmatprep.subr.bf16.mxu0 0
        %727 = vmatpush1.bf16.xpose.msra.mxu0 0
        %728 = vmatprep.subr.bf16.mxu0 0
        %729 = vmatpush1.bf16.xpose.msra.mxu0 0
        %730 = vmatprep.subr.bf16.mxu0 0
        %731 = vmatpush1.bf16.xpose.msra.mxu0 0
        %732 = vmatprep.subr.bf16.mxu0 0
        %733 = vmatpush1.bf16.xpose.msra.mxu0 0
        %734 = vmatprep.subr.bf16.mxu0 0
        %735 = vmatpush1.bf16.xpose.msra.mxu0 0
        %736 = vmatprep.subr.bf16.mxu0 0
        %737 = vmatpush1.bf16.xpose.msra.mxu0 0
        %738 = vmatprep.subr.bf16.mxu0 0
        %739 = vmatpush1.bf16.xpose.msra.mxu0 0
        %740 = vmatprep.subr.bf16.mxu0 0
        %741 = vmatpush1.bf16.xpose.msra.mxu0 0
        %742 = vmatprep.subr.bf16.mxu0 0
        %743 = vmatpush1.bf16.xpose.msra.mxu0 0
        %744 = vmatprep.subr.bf16.mxu0 0
        %745 = vmatpush1.bf16.xpose.msra.mxu0 0
        %746 = vmatprep.subr.bf16.mxu0 0
        %747 = vmatpush1.bf16.xpose.msra.mxu0 0
        %748 = vmatprep.subr.bf16.mxu0 0
        %749 = vmatpush1.bf16.xpose.msra.mxu0 0
        %750 = vmatprep.subr.bf16.mxu0 0
        %751 = vmatpush1.bf16.xpose.msra.mxu0 0
        %752 = vmatprep.mubr.bf16.mxu0 0
        %753 = vmatmul.mubr.bf16.gmra.mrb[0].mxu0 %v715
        %v754 = vpop.f32.mrb[0].mxu0
        %v755 = vadd.f32 0.0, %v754
        %v756 = vpop.f32.mrb[0].mxu0
        %v757 = vpop.f32.mrb[0].mxu0
        %v758 = vadd.f32 0.0, %v757
        %v759 = vpop.f32.mrb[0].mxu0
        %760 = vdwg.mxu0
        %v761 = vsel %vm406, %v755, -inf
        %762 = vmax.xlane.f32.xlu0 %v761
        %v763 = vpop.xlane.xlu0 %762
        %v764 = vsel %vm406, %v758, -inf
        %765 = vmax.xlane.f32.xlu0 %v764
        %v766 = vpop.xlane.xlu0 %765
        %v767 = vsub.f32 %v755, %v763
        %v768 = vsub.f32 %v758, %v766
        %v769 = vmul.f32 %v767, 1.442695
        %v770 = vpow.pop %v769
        %v771 = vmul.f32 %v768, 1.442695
        %v772 = vpow.pop %v771
        %v773 = vsel %vm406, %v770, 0.0
        %774 = vadd.xlane.f32.xlu0 %v773
        %v775 = vpop.xlane.xlu0 %774
        %v776 = vsel %vm406, %v772, 0.0
        %777 = vadd.xlane.f32.xlu0 %v776
        %v778 = vpop.xlane.xlu0 %777
        %v779 = vpack.c.bf16 %v772, %v770
        %780 = vrot.lane.b32.xlu0 %v354, 56
        %v781 = vpop.permute.xlu0 %780
        %v784 = vsel %vm406, %v779, 0
        %786 = vmatprep.subr.bf16.mxu0 0
        %787 = vmatpush1.bf16.msra.mxu0 %v781
        %788 = vmatprep.subr.bf16.mxu0 0
        %789 = vmatpush1.bf16.msra.mxu0 0
        %790 = vmatprep.subr.bf16.mxu0 0
        %791 = vmatpush1.bf16.msra.mxu0 0
        %792 = vmatprep.subr.bf16.mxu0 0
        %793 = vmatpush1.bf16.msra.mxu0 0
        %794 = vmatprep.subr.bf16.mxu0 0
        %795 = vmatpush1.bf16.msra.mxu0 0
        %796 = vmatprep.subr.bf16.mxu0 0
        %797 = vmatpush1.bf16.msra.mxu0 0
        %798 = vmatprep.subr.bf16.mxu0 0
        %799 = vmatpush1.bf16.msra.mxu0 0
        %800 = vmatprep.subr.bf16.mxu0 0
        %801 = vmatpush1.bf16.msra.mxu0 0
        %802 = vmatprep.subr.bf16.mxu0 0
        %803 = vmatpush1.bf16.msra.mxu0 0
        %804 = vmatprep.subr.bf16.mxu0 0
        %805 = vmatpush1.bf16.msra.mxu0 0
        %806 = vmatprep.subr.bf16.mxu0 0
        %807 = vmatpush1.bf16.msra.mxu0 0
        %808 = vmatprep.subr.bf16.mxu0 0
        %809 = vmatpush1.bf16.msra.mxu0 0
        %810 = vmatprep.subr.bf16.mxu0 0
        %811 = vmatpush1.bf16.msra.mxu0 0
        %812 = vmatprep.subr.bf16.mxu0 0
        %813 = vmatpush1.bf16.msra.mxu0 0
        %814 = vmatprep.subr.bf16.mxu0 0
        %815 = vmatpush1.bf16.msra.mxu0 0
        %816 = vmatprep.subr.bf16.mxu0 0
        %817 = vmatpush1.bf16.msra.mxu0 0
        %818 = vmatprep.mubr.bf16.mxu0 0
        %819 = vmatmul.mubr.bf16.gmra.mrb[0].mxu0 %v784
        %v820 = vpop.f32.mrb[0].mxu0
        %v821 = vadd.f32 0.0, %v820
        %v822 = vpop.f32.mrb[0].mxu0
        %v823 = vpop.f32.mrb[0].mxu0
        %v824 = vadd.f32 0.0, %v823
        %v825 = vpop.f32.mrb[0].mxu0
        %826 = vdwg.mxu0
        %v827 = vrcp.pop %v775
        %v828 = vrcp.pop %v778
        %v829 = vmul.f32 %v821, %v827
        %v830 = vmul.f32 %v824, %v828
        %v831 = vld [vmem:[#allocation3] sm:$0xff]
        %v832 = vld [vmem:[#allocation3 + $0x8] sm:$0xff]
        %v833 = vpack.c.bf16 %v830, %v829
        %s834 = scalar_lea.vmem [#allocation9], 4
        %v835 = vld [vmem:[%s834] sm:$0x3]
        %v837 = vsel %vm358, %v833, 0
        %v840 = vsel %vm484, %v835, 0
        %842 = vmatprep.subr.bf16.mxu0 0
        %843 = vmatpush1.bf16.msra.mxu0 %v840
        %844 = vmatprep.subr.bf16.mxu0 0
        %845 = vmatpush1.bf16.msra.mxu0 0
        %846 = vmatprep.subr.bf16.mxu0 0
        %847 = vmatpush1.bf16.msra.mxu0 0
        %848 = vmatprep.subr.bf16.mxu0 0
        %849 = vmatpush1.bf16.msra.mxu0 0
        %850 = vmatprep.subr.bf16.mxu0 0
        %851 = vmatpush1.bf16.msra.mxu0 0
        %852 = vmatprep.subr.bf16.mxu0 0
        %853 = vmatpush1.bf16.msra.mxu0 0
        %854 = vmatprep.subr.bf16.mxu0 0
        %855 = vmatpush1.bf16.msra.mxu0 0
        %856 = vmatprep.subr.bf16.mxu0 0
        %857 = vmatpush1.bf16.msra.mxu0 0
        %858 = vmatprep.subr.bf16.mxu0 0
        %859 = vmatpush1.bf16.msra.mxu0 0
        %860 = vmatprep.subr.bf16.mxu0 0
        %861 = vmatpush1.bf16.msra.mxu0 0
        %862 = vmatprep.subr.bf16.mxu0 0
        %863 = vmatpush1.bf16.msra.mxu0 0
        %864 = vmatprep.subr.bf16.mxu0 0
        %865 = vmatpush1.bf16.msra.mxu0 0
        %866 = vmatprep.subr.bf16.mxu0 0
        %867 = vmatpush1.bf16.msra.mxu0 0
        %868 = vmatprep.subr.bf16.mxu0 0
        %869 = vmatpush1.bf16.msra.mxu0 0
        %870 = vmatprep.subr.bf16.mxu0 0
        %871 = vmatpush1.bf16.msra.mxu0 0
        %872 = vmatprep.subr.bf16.mxu0 0
        %873 = vmatpush1.bf16.msra.mxu0 0
        %874 = vmatprep.mubr.bf16.mxu0 0
        %875 = vmatmul.mubr.bf16.gmra.mrb[0].mxu0 %v837
        %v876 = vpop.f32.mrb[0].mxu0
        %v877 = vadd.f32 0.0, %v876
        %v878 = vpop.f32.mrb[0].mxu0
        %v879 = vpop.f32.mrb[0].mxu0
        %v880 = vadd.f32 0.0, %v879
        %v881 = vpop.f32.mrb[0].mxu0
        %882 = vdwg.mxu0
        %v883 = vadd.f32 %v831, %v877
        %v884 = vadd.f32 %v832, %v880
        %885 = vst.msk [vmem:[#allocation3] sm:$0xff] %vm309, %v883
        %886 = vst.msk [vmem:[#allocation3 + $0x8] sm:$0xff] %vm309, %v884
        %887 = vrot.lane.b32.xlu0 %v354, 116
        %v888 = vpop.permute.xlu0 %887
        %889 = vrot.lane.b32.xlu0 %v354, 84
        %v890 = vpop.permute.xlu0 %889
        %v892 = vsel %vm358, %v888, 0
        %v895 = vsel %vm358, %v890, 0
        %897 = vmatprep.subr.bf16.mxu0 0
        %898 = vmatpush1.bf16.xpose.msra.mxu0 %v895
        %899 = vmatprep.subr.bf16.mxu0 0
        %900 = vmatpush1.bf16.xpose.msra.mxu0 0
        %901 = vmatprep.subr.bf16.mxu0 0
        %902 = vmatpush1.bf16.xpose.msra.mxu0 0
        %903 = vmatprep.subr.bf16.mxu0 0
        %904 = vmatpush1.bf16.xpose.msra.mxu0 0
        %905 = vmatprep.subr.bf16.mxu0 0
        %906 = vmatpush1.bf16.xpose.msra.mxu0 0
        %907 = vmatprep.subr.bf16.mxu0 0
        %908 = vmatpush1.bf16.xpose.msra.mxu0 0
        %909 = vmatprep.subr.bf16.mxu0 0
        %910 = vmatpush1.bf16.xpose.msra.mxu0 0
        %911 = vmatprep.subr.bf16.mxu0 0
        %912 = vmatpush1.bf16.xpose.msra.mxu0 0
        %913 = vmatprep.subr.bf16.mxu0 0
        %914 = vmatpush1.bf16.xpose.msra.mxu0 0
        %915 = vmatprep.subr.bf16.mxu0 0
        %916 = vmatpush1.bf16.xpose.msra.mxu0 0
        %917 = vmatprep.subr.bf16.mxu0 0
        %918 = vmatpush1.bf16.xpose.msra.mxu0 0
        %919 = vmatprep.subr.bf16.mxu0 0
        %920 = vmatpush1.bf16.xpose.msra.mxu0 0
        %921 = vmatprep.subr.bf16.mxu0 0
        %922 = vmatpush1.bf16.xpose.msra.mxu0 0
        %923 = vmatprep.subr.bf16.mxu0 0
        %924 = vmatpush1.bf16.xpose.msra.mxu0 0
        %925 = vmatprep.subr.bf16.mxu0 0
        %926 = vmatpush1.bf16.xpose.msra.mxu0 0
        %927 = vmatprep.subr.bf16.mxu0 0
        %928 = vmatpush1.bf16.xpose.msra.mxu0 0
        %929 = vmatprep.mubr.bf16.mxu0 0
        %930 = vmatmul.mubr.bf16.gmra.mrb[0].mxu0 %v892
        %v931 = vpop.f32.mrb[0].mxu0
        %v932 = vadd.f32 0.0, %v931
        %v933 = vpop.f32.mrb[0].mxu0
        %v934 = vpop.f32.mrb[0].mxu0
        %v935 = vadd.f32 0.0, %v934
        %v936 = vpop.f32.mrb[0].mxu0
        %937 = vdwg.mxu0
        %v938 = vsel %vm406, %v932, -inf
        %939 = vmax.xlane.f32.xlu0 %v938
        %v940 = vpop.xlane.xlu0 %939
        %v941 = vsel %vm406, %v935, -inf
        %942 = vmax.xlane.f32.xlu0 %v941
        %v943 = vpop.xlane.xlu0 %942
        %v944 = vsub.f32 %v932, %v940
        %v945 = vsub.f32 %v935, %v943
        %v946 = vmul.f32 %v944, 1.442695
        %v947 = vpow.pop %v946
        %v948 = vmul.f32 %v945, 1.442695
        %v949 = vpow.pop %v948
        %v950 = vsel %vm406, %v947, 0.0
        %951 = vadd.xlane.f32.xlu0 %v950
        %v952 = vpop.xlane.xlu0 %951
        %v953 = vsel %vm406, %v949, 0.0
        %954 = vadd.xlane.f32.xlu0 %v953
        %v955 = vpop.xlane.xlu0 %954
        %v956 = vpack.c.bf16 %v949, %v947
        %957 = vrot.lane.b32.xlu0 %v354, 52
        %v958 = vpop.permute.xlu0 %957
        %v961 = vsel %vm406, %v956, 0
        %963 = vmatprep.subr.bf16.mxu0 0
        %964 = vmatpush1.bf16.msra.mxu0 %v958
        %965 = vmatprep.subr.bf16.mxu0 0
        %966 = vmatpush1.bf16.msra.mxu0 0
        %967 = vmatprep.subr.bf16.mxu0 0
        %968 = vmatpush1.bf16.msra.mxu0 0
        %969 = vmatprep.subr.bf16.mxu0 0
        %970 = vmatpush1.bf16.msra.mxu0 0
        %971 = vmatprep.subr.bf16.mxu0 0
        %972 = vmatpush1.bf16.msra.mxu0 0
        %973 = vmatprep.subr.bf16.mxu0 0
        %974 = vmatpush1.bf16.msra.mxu0 0
        %975 = vmatprep.subr.bf16.mxu0 0
        %976 = vmatpush1.bf16.msra.mxu0 0
        %977 = vmatprep.subr.bf16.mxu0 0
        %978 = vmatpush1.bf16.msra.mxu0 0
        %979 = vmatprep.subr.bf16.mxu0 0
        %980 = vmatpush1.bf16.msra.mxu0 0
        %981 = vmatprep.subr.bf16.mxu0 0
        %982 = vmatpush1.bf16.msra.mxu0 0
        %983 = vmatprep.subr.bf16.mxu0 0
        %984 = vmatpush1.bf16.msra.mxu0 0
        %985 = vmatprep.subr.bf16.mxu0 0
        %986 = vmatpush1.bf16.msra.mxu0 0
        %987 = vmatprep.subr.bf16.mxu0 0
        %988 = vmatpush1.bf16.msra.mxu0 0
        %989 = vmatprep.subr.bf16.mxu0 0
        %990 = vmatpush1.bf16.msra.mxu0 0
        %991 = vmatprep.subr.bf16.mxu0 0
        %992 = vmatpush1.bf16.msra.mxu0 0
        %993 = vmatprep.subr.bf16.mxu0 0
        %994 = vmatpush1.bf16.msra.mxu0 0
        %995 = vmatprep.mubr.bf16.mxu0 0
        %996 = vmatmul.mubr.bf16.gmra.mrb[0].mxu0 %v961
        %v997 = vpop.f32.mrb[0].mxu0
        %v998 = vadd.f32 0.0, %v997
        %v999 = vpop.f32.mrb[0].mxu0
        %v1000 = vpop.f32.mrb[0].mxu0
        %v1001 = vadd.f32 0.0, %v1000
        %v1002 = vpop.f32.mrb[0].mxu0
        %1003 = vdwg.mxu0
        %v1004 = vrcp.pop %v952
        %v1005 = vrcp.pop %v955
        %v1006 = vmul.f32 %v998, %v1004
        %v1007 = vmul.f32 %v1001, %v1005
        %v1008 = vld [vmem:[#allocation3] sm:$0xff]
        %v1009 = vld [vmem:[#allocation3 + $0x8] sm:$0xff]
        %v1010 = vpack.c.bf16 %v1007, %v1006
        %s1011 = scalar_lea.vmem [#allocation9], 6
        %v1012 = vld [vmem:[%s1011] sm:$0x3]
        %v1014 = vsel %vm358, %v1010, 0
        %v1017 = vsel %vm484, %v1012, 0
        %1019 = vmatprep.subr.bf16.mxu0 0
        %1020 = vmatpush1.bf16.msra.mxu0 %v1017
        %1021 = vmatprep.subr.bf16.mxu0 0
        %1022 = vmatpush1.bf16.msra.mxu0 0
        %1023 = vmatprep.subr.bf16.mxu0 0
        %1024 = vmatpush1.bf16.msra.mxu0 0
        %1025 = vmatprep.subr.bf16.mxu0 0
        %1026 = vmatpush1.bf16.msra.mxu0 0
        %1027 = vmatprep.subr.bf16.mxu0 0
        %1028 = vmatpush1.bf16.msra.mxu0 0
        %1029 = vmatprep.subr.bf16.mxu0 0
        %1030 = vmatpush1.bf16.msra.mxu0 0
        %1031 = vmatprep.subr.bf16.mxu0 0
        %1032 = vmatpush1.bf16.msra.mxu0 0
        %1033 = vmatprep.subr.bf16.mxu0 0
        %1034 = vmatpush1.bf16.msra.mxu0 0
        %1035 = vmatprep.subr.bf16.mxu0 0
        %1036 = vmatpush1.bf16.msra.mxu0 0
        %1037 = vmatprep.subr.bf16.mxu0 0
        %1038 = vmatpush1.bf16.msra.mxu0 0
        %1039 = vmatprep.subr.bf16.mxu0 0
        %1040 = vmatpush1.bf16.msra.mxu0 0
        %1041 = vmatprep.subr.bf16.mxu0 0
        %1042 = vmatpush1.bf16.msra.mxu0 0
        %1043 = vmatprep.subr.bf16.mxu0 0
        %1044 = vmatpush1.bf16.msra.mxu0 0
        %1045 = vmatprep.subr.bf16.mxu0 0
        %1046 = vmatpush1.bf16.msra.mxu0 0
        %1047 = vmatprep.subr.bf16.mxu0 0
        %1048 = vmatpush1.bf16.msra.mxu0 0
        %1049 = vmatprep.subr.bf16.mxu0 0
        %1050 = vmatpush1.bf16.msra.mxu0 0
        %1051 = vmatprep.mubr.bf16.mxu0 0
        %1052 = vmatmul.mubr.bf16.gmra.mrb[0].mxu0 %v1014
        %v1053 = vpop.f32.mrb[0].mxu0
        %v1054 = vadd.f32 0.0, %v1053
        %v1055 = vpop.f32.mrb[0].mxu0
        %v1056 = vpop.f32.mrb[0].mxu0
        %v1057 = vadd.f32 0.0, %v1056
        %v1058 = vpop.f32.mrb[0].mxu0
        %1059 = vdwg.mxu0
        %v1060 = vadd.f32 %v1008, %v1054
        %v1061 = vadd.f32 %v1009, %v1057
        %1062 = vst.msk [vmem:[#allocation3] sm:$0xff] %vm309, %v1060
        %1063 = vst.msk [vmem:[#allocation3 + $0x8] sm:$0xff] %vm309, %v1061
        %1064 = vrot.lane.b32.xlu0 %v354, 112
        %v1065 = vpop.permute.xlu0 %1064
        %1066 = vrot.lane.b32.xlu0 %v354, 80
        %v1067 = vpop.permute.xlu0 %1066
        %v1069 = vsel %vm358, %v1065, 0
        %v1072 = vsel %vm358, %v1067, 0
        %1074 = vmatprep.subr.bf16.mxu0 0
        %1075 = vmatpush1.bf16.xpose.msra.mxu0 %v1072
        %1076 = vmatprep.subr.bf16.mxu0 0
        %1077 = vmatpush1.bf16.xpose.msra.mxu0 0
        %1078 = vmatprep.subr.bf16.mxu0 0
        %1079 = vmatpush1.bf16.xpose.msra.mxu0 0
        %1080 = vmatprep.subr.bf16.mxu0 0
        %1081 = vmatpush1.bf16.xpose.msra.mxu0 0
        %1082 = vmatprep.subr.bf16.mxu0 0
        %1083 = vmatpush1.bf16.xpose.msra.mxu0 0
        %1084 = vmatprep.subr.bf16.mxu0 0
        %1085 = vmatpush1.bf16.xpose.msra.mxu0 0
        %1086 = vmatprep.subr.bf16.mxu0 0
        %1087 = vmatpush1.bf16.xpose.msra.mxu0 0
        %1088 = vmatprep.subr.bf16.mxu0 0
        %1089 = vmatpush1.bf16.xpose.msra.mxu0 0
        %1090 = vmatprep.subr.bf16.mxu0 0
        %1091 = vmatpush1.bf16.xpose.msra.mxu0 0
        %1092 = vmatprep.subr.bf16.mxu0 0
        %1093 = vmatpush1.bf16.xpose.msra.mxu0 0
        %1094 = vmatprep.subr.bf16.mxu0 0
        %1095 = vmatpush1.bf16.xpose.msra.mxu0 0
        %1096 = vmatprep.subr.bf16.mxu0 0
        %1097 = vmatpush1.bf16.xpose.msra.mxu0 0
        %1098 = vmatprep.subr.bf16.mxu0 0
        %1099 = vmatpush1.bf16.xpose.msra.mxu0 0
        %1100 = vmatprep.subr.bf16.mxu0 0
        %1101 = vmatpush1.bf16.xpose.msra.mxu0 0
        %1102 = vmatprep.subr.bf16.mxu0 0
        %1103 = vmatpush1.bf16.xpose.msra.mxu0 0
        %1104 = vmatprep.subr.bf16.mxu0 0
        %1105 = vmatpush1.bf16.xpose.msra.mxu0 0
        %1106 = vmatprep.mubr.bf16.mxu0 0
        %1107 = vmatmul.mubr.bf16.gmra.mrb[0].mxu0 %v1069
        %v1108 = vpop.f32.mrb[0].mxu0
        %v1109 = vadd.f32 0.0, %v1108
        %v1110 = vpop.f32.mrb[0].mxu0
        %v1111 = vpop.f32.mrb[0].mxu0
        %v1112 = vadd.f32 0.0, %v1111
        %v1113 = vpop.f32.mrb[0].mxu0
        %1114 = vdwg.mxu0
        %v1115 = vsel %vm406, %v1109, -inf
        %1116 = vmax.xlane.f32.xlu0 %v1115
        %v1117 = vpop.xlane.xlu0 %1116
        %v1118 = vsel %vm406, %v1112, -inf
        %1119 = vmax.xlane.f32.xlu0 %v1118
        %v1120 = vpop.xlane.xlu0 %1119
        %v1121 = vsub.f32 %v1109, %v1117
        %v1122 = vsub.f32 %v1112, %v1120
        %v1123 = vmul.f32 %v1121, 1.442695
        %v1124 = vpow.pop %v1123
        %v1125 = vmul.f32 %v1122, 1.442695
        %v1126 = vpow.pop %v1125
        %v1127 = vsel %vm406, %v1124, 0.0
        %1128 = vadd.xlane.f32.xlu0 %v1127
        %v1129 = vpop.xlane.xlu0 %1128
        %v1130 = vsel %vm406, %v1126, 0.0
        %1131 = vadd.xlane.f32.xlu0 %v1130
        %v1132 = vpop.xlane.xlu0 %1131
        %v1133 = vpack.c.bf16 %v1126, %v1124
        %1134 = vrot.lane.b32.xlu0 %v354, 48
        %v1135 = vpop.permute.xlu0 %1134
        %v1138 = vsel %vm406, %v1133, 0
        %1140 = vmatprep.subr.bf16.mxu0 0
        %1141 = vmatpush1.bf16.msra.mxu0 %v1135
        %1142 = vmatprep.subr.bf16.mxu0 0
        %1143 = vmatpush1.bf16.msra.mxu0 0
        %1144 = vmatprep.subr.bf16.mxu0 0
        %1145 = vmatpush1.bf16.msra.mxu0 0
        %1146 = vmatprep.subr.bf16.mxu0 0
        %1147 = vmatpush1.bf16.msra.mxu0 0
        %1148 = vmatprep.subr.bf16.mxu0 0
        %1149 = vmatpush1.bf16.msra.mxu0 0
        %1150 = vmatprep.subr.bf16.mxu0 0
        %1151 = vmatpush1.bf16.msra.mxu0 0
        %1152 = vmatprep.subr.bf16.mxu0 0
        %1153 = vmatpush1.bf16.msra.mxu0 0
        %1154 = vmatprep.subr.bf16.mxu0 0
        %1155 = vmatpush1.bf16.msra.mxu0 0
        %1156 = vmatprep.subr.bf16.mxu0 0
        %1157 = vmatpush1.bf16.msra.mxu0 0
        %1158 = vmatprep.subr.bf16.mxu0 0
        %1159 = vmatpush1.bf16.msra.mxu0 0
        %1160 = vmatprep.subr.bf16.mxu0 0
        %1161 = vmatpush1.bf16.msra.mxu0 0
        %1162 = vmatprep.subr.bf16.mxu0 0
        %1163 = vmatpush1.bf16.msra.mxu0 0
        %1164 = vmatprep.subr.bf16.mxu0 0
        %1165 = vmatpush1.bf16.msra.mxu0 0
        %1166 = vmatprep.subr.bf16.mxu0 0
        %1167 = vmatpush1.bf16.msra.mxu0 0
        %1168 = vmatprep.subr.bf16.mxu0 0
        %1169 = vmatpush1.bf16.msra.mxu0 0
        %1170 = vmatprep.subr.bf16.mxu0 0
        %1171 = vmatpush1.bf16.msra.mxu0 0
        %1172 = vmatprep.mubr.bf16.mxu0 0
        %1173 = vmatmul.mubr.bf16.gmra.mrb[0].mxu0 %v1138
        %v1174 = vpop.f32.mrb[0].mxu0
        %v1175 = vadd.f32 0.0, %v1174
        %v1176 = vpop.f32.mrb[0].mxu0
        %v1177 = vpop.f32.mrb[0].mxu0
        %v1178 = vadd.f32 0.0, %v1177
        %v1179 = vpop.f32.mrb[0].mxu0
        %1180 = vdwg.mxu0
        %v1181 = vrcp.pop %v1129
        %v1182 = vrcp.pop %v1132
        %v1183 = vmul.f32 %v1175, %v1181
        %v1184 = vmul.f32 %v1178, %v1182
        %v1185 = vld [vmem:[#allocation3] sm:$0xff]
        %v1186 = vld [vmem:[#allocation3 + $0x8] sm:$0xff]
        %v1187 = vpack.c.bf16 %v1184, %v1183
        %s1188 = scalar_lea.vmem [#allocation9], 8
        %v1189 = vld [vmem:[%s1188] sm:$0x3]
        %v1191 = vsel %vm358, %v1187, 0
        %v1194 = vsel %vm484, %v1189, 0
        %1196 = vmatprep.subr.bf16.mxu0 0
        %1197 = vmatpush1.bf16.msra.mxu0 %v1194
        %1198 = vmatprep.subr.bf16.mxu0 0
        %1199 = vmatpush1.bf16.msra.mxu0 0
        %1200 = vmatprep.subr.bf16.mxu0 0
        %1201 = vmatpush1.bf16.msra.mxu0 0
        %1202 = vmatprep.subr.bf16.mxu0 0
        %1203 = vmatpush1.bf16.msra.mxu0 0
        %1204 = vmatprep.subr.bf16.mxu0 0
        %1205 = vmatpush1.bf16.msra.mxu0 0
        %1206 = vmatprep.subr.bf16.mxu0 0
        %1207 = vmatpush1.bf16.msra.mxu0 0
        %1208 = vmatprep.subr.bf16.mxu0 0
        %1209 = vmatpush1.bf16.msra.mxu0 0
        %1210 = vmatprep.subr.bf16.mxu0 0
        %1211 = vmatpush1.bf16.msra.mxu0 0
        %1212 = vmatprep.subr.bf16.mxu0 0
        %1213 = vmatpush1.bf16.msra.mxu0 0
        %1214 = vmatprep.subr.bf16.mxu0 0
        %1215 = vmatpush1.bf16.msra.mxu0 0
        %1216 = vmatprep.subr.bf16.mxu0 0
        %1217 = vmatpush1.bf16.msra.mxu0 0
        %1218 = vmatprep.subr.bf16.mxu0 0
        %1219 = vmatpush1.bf16.msra.mxu0 0
        %1220 = vmatprep.subr.bf16.mxu0 0
        %1221 = vmatpush1.bf16.msra.mxu0 0
        %1222 = vmatprep.subr.bf16.mxu0 0
        %1223 = vmatpush1.bf16.msra.mxu0 0
        %1224 = vmatprep.subr.bf16.mxu0 0
        %1225 = vmatpush1.bf16.msra.mxu0 0
        %1226 = vmatprep.subr.bf16.mxu0 0
        %1227 = vmatpush1.bf16.msra.mxu0 0
        %1228 = vmatprep.mubr.bf16.mxu0 0
        %1229 = vmatmul.mubr.bf16.gmra.mrb[0].mxu0 %v1191
        %v1230 = vpop.f32.mrb[0].mxu0
        %v1231 = vadd.f32 0.0, %v1230
        %v1232 = vpop.f32.mrb[0].mxu0
        %v1233 = vpop.f32.mrb[0].mxu0
        %v1234 = vadd.f32 0.0, %v1233
        %v1235 = vpop.f32.mrb[0].mxu0
        %1236 = vdwg.mxu0
        %v1237 = vadd.f32 %v1185, %v1231
        %v1238 = vadd.f32 %v1186, %v1234
        %1239 = vst.msk [vmem:[#allocation3] sm:$0xff] %vm309, %v1237
        %1240 = vst.msk [vmem:[#allocation3 + $0x8] sm:$0xff] %vm309, %v1238
        %1241 = vrot.lane.b32.xlu0 %v354, 108
        %v1242 = vpop.permute.xlu0 %1241
        %1243 = vrot.lane.b32.xlu0 %v354, 76
        %v1244 = vpop.permute.xlu0 %1243
        %v1246 = vsel %vm358, %v1242, 0
        %v1249 = vsel %vm358, %v1244, 0
        %1251 = vmatprep.subr.bf16.mxu0 0
        %1252 = vmatpush1.bf16.xpose.msra.mxu0 %v1249
        %1253 = vmatprep.subr.bf16.mxu0 0
        %1254 = vmatpush1.bf16.xpose.msra.mxu0 0
        %1255 = vmatprep.subr.bf16.mxu0 0
        %1256 = vmatpush1.bf16.xpose.msra.mxu0 0
        %1257 = vmatprep.subr.bf16.mxu0 0
        %1258 = vmatpush1.bf16.xpose.msra.mxu0 0
        %1259 = vmatprep.subr.bf16.mxu0 0
        %1260 = vmatpush1.bf16.xpose.msra.mxu0 0
        %1261 = vmatprep.subr.bf16.mxu0 0
        %1262 = vmatpush1.bf16.xpose.msra.mxu0 0
        %1263 = vmatprep.subr.bf16.mxu0 0
        %1264 = vmatpush1.bf16.xpose.msra.mxu0 0
        %1265 = vmatprep.subr.bf16.mxu0 0
        %1266 = vmatpush1.bf16.xpose.msra.mxu0 0
        %1267 = vmatprep.subr.bf16.mxu0 0
        %1268 = vmatpush1.bf16.xpose.msra.mxu0 0
        %1269 = vmatprep.subr.bf16.mxu0 0
        %1270 = vmatpush1.bf16.xpose.msra.mxu0 0
        %1271 = vmatprep.subr.bf16.mxu0 0
        %1272 = vmatpush1.bf16.xpose.msra.mxu0 0
        %1273 = vmatprep.subr.bf16.mxu0 0
        %1274 = vmatpush1.bf16.xpose.msra.mxu0 0
        %1275 = vmatprep.subr.bf16.mxu0 0
        %1276 = vmatpush1.bf16.xpose.msra.mxu0 0
        %1277 = vmatprep.subr.bf16.mxu0 0
        %1278 = vmatpush1.bf16.xpose.msra.mxu0 0
        %1279 = vmatprep.subr.bf16.mxu0 0
        %1280 = vmatpush1.bf16.xpose.msra.mxu0 0
        %1281 = vmatprep.subr.bf16.mxu0 0
        %1282 = vmatpush1.bf16.xpose.msra.mxu0 0
        %1283 = vmatprep.mubr.bf16.mxu0 0
        %1284 = vmatmul.mubr.bf16.gmra.mrb[0].mxu0 %v1246
        %v1285 = vpop.f32.mrb[0].mxu0
        %v1286 = vadd.f32 0.0, %v1285
        %v1287 = vpop.f32.mrb[0].mxu0
        %v1288 = vpop.f32.mrb[0].mxu0
        %v1289 = vadd.f32 0.0, %v1288
        %v1290 = vpop.f32.mrb[0].mxu0
        %1291 = vdwg.mxu0
        %v1292 = vsel %vm406, %v1286, -inf
        %1293 = vmax.xlane.f32.xlu0 %v1292
        %v1294 = vpop.xlane.xlu0 %1293
        %v1295 = vsel %vm406, %v1289, -inf
        %1296 = vmax.xlane.f32.xlu0 %v1295
        %v1297 = vpop.xlane.xlu0 %1296
        %v1298 = vsub.f32 %v1286, %v1294
        %v1299 = vsub.f32 %v1289, %v1297
        %v1300 = vmul.f32 %v1298, 1.442695
        %v1301 = vpow.pop %v1300
        %v1302 = vmul.f32 %v1299, 1.442695
        %v1303 = vpow.pop %v1302
        %v1304 = vsel %vm406, %v1301, 0.0
        %1305 = vadd.xlane.f32.xlu0 %v1304
        %v1306 = vpop.xlane.xlu0 %1305
        %v1307 = vsel %vm406, %v1303, 0.0
        %1308 = vadd.xlane.f32.xlu0 %v1307
        %v1309 = vpop.xlane.xlu0 %1308
        %v1310 = vpack.c.bf16 %v1303, %v1301
        %1311 = vrot.lane.b32.xlu0 %v354, 44
        %v1312 = vpop.permute.xlu0 %1311
        %v1315 = vsel %vm406, %v1310, 0
        %1317 = vmatprep.subr.bf16.mxu0 0
        %1318 = vmatpush1.bf16.msra.mxu0 %v1312
        %1319 = vmatprep.subr.bf16.mxu0 0
        %1320 = vmatpush1.bf16.msra.mxu0 0
        %1321 = vmatprep.subr.bf16.mxu0 0
        %1322 = vmatpush1.bf16.msra.mxu0 0
        %1323 = vmatprep.subr.bf16.mxu0 0
        %1324 = vmatpush1.bf16.msra.mxu0 0
        %1325 = vmatprep.subr.bf16.mxu0 0
        %1326 = vmatpush1.bf16.msra.mxu0 0
        %1327 = vmatprep.subr.bf16.mxu0 0
        %1328 = vmatpush1.bf16.msra.mxu0 0
        %1329 = vmatprep.subr.bf16.mxu0 0
        %1330 = vmatpush1.bf16.msra.mxu0 0
        %1331 = vmatprep.subr.bf16.mxu0 0
        %1332 = vmatpush1.bf16.msra.mxu0 0
        %1333 = vmatprep.subr.bf16.mxu0 0
        %1334 = vmatpush1.bf16.msra.mxu0 0
        %1335 = vmatprep.subr.bf16.mxu0 0
        %1336 = vmatpush1.bf16.msra.mxu0 0
        %1337 = vmatprep.subr.bf16.mxu0 0
        %1338 = vmatpush1.bf16.msra.mxu0 0
        %1339 = vmatprep.subr.bf16.mxu0 0
        %1340 = vmatpush1.bf16.msra.mxu0 0
        %1341 = vmatprep.subr.bf16.mxu0 0
        %1342 = vmatpush1.bf16.msra.mxu0 0
        %1343 = vmatprep.subr.bf16.mxu0 0
        %1344 = vmatpush1.bf16.msra.mxu0 0
        %1345 = vmatprep.subr.bf16.mxu0 0
        %1346 = vmatpush1.bf16.msra.mxu0 0
        %1347 = vmatprep.subr.bf16.mxu0 0
        %1348 = vmatpush1.bf16.msra.mxu0 0
        %1349 = vmatprep.mubr.bf16.mxu0 0
        %1350 = vmatmul.mubr.bf16.gmra.mrb[0].mxu0 %v1315
        %v1351 = vpop.f32.mrb[0].mxu0
        %v1352 = vadd.f32 0.0, %v1351
        %v1353 = vpop.f32.mrb[0].mxu0
        %v1354 = vpop.f32.mrb[0].mxu0
        %v1355 = vadd.f32 0.0, %v1354
        %v1356 = vpop.f32.mrb[0].mxu0
        %1357 = vdwg.mxu0
        %v1358 = vrcp.pop %v1306
        %v1359 = vrcp.pop %v1309
        %v1360 = vmul.f32 %v1352, %v1358
        %v1361 = vmul.f32 %v1355, %v1359
        %v1362 = vld [vmem:[#allocation3] sm:$0xff]
        %v1363 = vld [vmem:[#allocation3 + $0x8] sm:$0xff]
        %v1364 = vpack.c.bf16 %v1361, %v1360
        %s1365 = scalar_lea.vmem [#allocation9], 10
        %v1366 = vld [vmem:[%s1365] sm:$0x3]
        %v1368 = vsel %vm358, %v1364, 0
        %v1371 = vsel %vm484, %v1366, 0
        %1373 = vmatprep.subr.bf16.mxu0 0
        %1374 = vmatpush1.bf16.msra.mxu0 %v1371
        %1375 = vmatprep.subr.bf16.mxu0 0
        %1376 = vmatpush1.bf16.msra.mxu0 0
        %1377 = vmatprep.subr.bf16.mxu0 0
        %1378 = vmatpush1.bf16.msra.mxu0 0
        %1379 = vmatprep.subr.bf16.mxu0 0
        %1380 = vmatpush1.bf16.msra.mxu0 0
        %1381 = vmatprep.subr.bf16.mxu0 0
        %1382 = vmatpush1.bf16.msra.mxu0 0
        %1383 = vmatprep.subr.bf16.mxu0 0
        %1384 = vmatpush1.bf16.msra.mxu0 0
        %1385 = vmatprep.subr.bf16.mxu0 0
        %1386 = vmatpush1.bf16.msra.mxu0 0
        %1387 = vmatprep.subr.bf16.mxu0 0
        %1388 = vmatpush1.bf16.msra.mxu0 0
        %1389 = vmatprep.subr.bf16.mxu0 0
        %1390 = vmatpush1.bf16.msra.mxu0 0
        %1391 = vmatprep.subr.bf16.mxu0 0
        %1392 = vmatpush1.bf16.msra.mxu0 0
        %1393 = vmatprep.subr.bf16.mxu0 0
        %1394 = vmatpush1.bf16.msra.mxu0 0
        %1395 = vmatprep.subr.bf16.mxu0 0
        %1396 = vmatpush1.bf16.msra.mxu0 0
        %1397 = vmatprep.subr.bf16.mxu0 0
        %1398 = vmatpush1.bf16.msra.mxu0 0
        %1399 = vmatprep.subr.bf16.mxu0 0
        %1400 = vmatpush1.bf16.msra.mxu0 0
        %1401 = vmatprep.subr.bf16.mxu0 0
        %1402 = vmatpush1.bf16.msra.mxu0 0
        %1403 = vmatprep.subr.bf16.mxu0 0
        %1404 = vmatpush1.bf16.msra.mxu0 0
        %1405 = vmatprep.mubr.bf16.mxu0 0
        %1406 = vmatmul.mubr.bf16.gmra.mrb[0].mxu0 %v1368
        %v1407 = vpop.f32.mrb[0].mxu0
        %v1408 = vadd.f32 0.0, %v1407
        %v1409 = vpop.f32.mrb[0].mxu0
        %v1410 = vpop.f32.mrb[0].mxu0
        %v1411 = vadd.f32 0.0, %v1410
        %v1412 = vpop.f32.mrb[0].mxu0
        %1413 = vdwg.mxu0
        %v1414 = vadd.f32 %v1362, %v1408
        %v1415 = vadd.f32 %v1363, %v1411
        %1416 = vst.msk [vmem:[#allocation3] sm:$0xff] %vm309, %v1414
        %1417 = vst.msk [vmem:[#allocation3 + $0x8] sm:$0xff] %vm309, %v1415
        %1418 = vrot.lane.b32.xlu0 %v354, 104
        %v1419 = vpop.permute.xlu0 %1418
        %1420 = vrot.lane.b32.xlu0 %v354, 72
        %v1421 = vpop.permute.xlu0 %1420
        %v1423 = vsel %vm358, %v1419, 0
        %v1426 = vsel %vm358, %v1421, 0
        %1428 = vmatprep.subr.bf16.mxu0 0
        %1429 = vmatpush1.bf16.xpose.msra.mxu0 %v1426
        %1430 = vmatprep.subr.bf16.mxu0 0
        %1431 = vmatpush1.bf16.xpose.msra.mxu0 0
        %1432 = vmatprep.subr.bf16.mxu0 0
        %1433 = vmatpush1.bf16.xpose.msra.mxu0 0
        %1434 = vmatprep.subr.bf16.mxu0 0
        %1435 = vmatpush1.bf16.xpose.msra.mxu0 0
        %1436 = vmatprep.subr.bf16.mxu0 0
        %1437 = vmatpush1.bf16.xpose.msra.mxu0 0
        %1438 = vmatprep.subr.bf16.mxu0 0
        %1439 = vmatpush1.bf16.xpose.msra.mxu0 0
        %1440 = vmatprep.subr.bf16.mxu0 0
        %1441 = vmatpush1.bf16.xpose.msra.mxu0 0
        %1442 = vmatprep.subr.bf16.mxu0 0
        %1443 = vmatpush1.bf16.xpose.msra.mxu0 0
        %1444 = vmatprep.subr.bf16.mxu0 0
        %1445 = vmatpush1.bf16.xpose.msra.mxu0 0
        %1446 = vmatprep.subr.bf16.mxu0 0
        %1447 = vmatpush1.bf16.xpose.msra.mxu0 0
        %1448 = vmatprep.subr.bf16.mxu0 0
        %1449 = vmatpush1.bf16.xpose.msra.mxu0 0
        %1450 = vmatprep.subr.bf16.mxu0 0
        %1451 = vmatpush1.bf16.xpose.msra.mxu0 0
        %1452 = vmatprep.subr.bf16.mxu0 0
        %1453 = vmatpush1.bf16.xpose.msra.mxu0 0
        %1454 = vmatprep.subr.bf16.mxu0 0
        %1455 = vmatpush1.bf16.xpose.msra.mxu0 0
        %1456 = vmatprep.subr.bf16.mxu0 0
        %1457 = vmatpush1.bf16.xpose.msra.mxu0 0
        %1458 = vmatprep.subr.bf16.mxu0 0
        %1459 = vmatpush1.bf16.xpose.msra.mxu0 0
        %1460 = vmatprep.mubr.bf16.mxu0 0
        %1461 = vmatmul.mubr.bf16.gmra.mrb[0].mxu0 %v1423
        %v1462 = vpop.f32.mrb[0].mxu0
        %v1463 = vadd.f32 0.0, %v1462
        %v1464 = vpop.f32.mrb[0].mxu0
        %v1465 = vpop.f32.mrb[0].mxu0
        %v1466 = vadd.f32 0.0, %v1465
        %v1467 = vpop.f32.mrb[0].mxu0
        %1468 = vdwg.mxu0
        %v1469 = vsel %vm406, %v1463, -inf
        %1470 = vmax.xlane.f32.xlu0 %v1469
        %v1471 = vpop.xlane.xlu0 %1470
        %v1472 = vsel %vm406, %v1466, -inf
        %1473 = vmax.xlane.f32.xlu0 %v1472
        %v1474 = vpop.xlane.xlu0 %1473
        %v1475 = vsub.f32 %v1463, %v1471
        %v1476 = vsub.f32 %v1466, %v1474
        %v1477 = vmul.f32 %v1475, 1.442695
        %v1478 = vpow.pop %v1477
        %v1479 = vmul.f32 %v1476, 1.442695
        %v1480 = vpow.pop %v1479
        %v1481 = vsel %vm406, %v1478, 0.0
        %1482 = vadd.xlane.f32.xlu0 %v1481
        %v1483 = vpop.xlane.xlu0 %1482
        %v1484 = vsel %vm406, %v1480, 0.0
        %1485 = vadd.xlane.f32.xlu0 %v1484
        %v1486 = vpop.xlane.xlu0 %1485
        %v1487 = vpack.c.bf16 %v1480, %v1478
        %1488 = vrot.lane.b32.xlu0 %v354, 40
        %v1489 = vpop.permute.xlu0 %1488
        %v1492 = vsel %vm406, %v1487, 0
        %1494 = vmatprep.subr.bf16.mxu0 0
        %1495 = vmatpush1.bf16.msra.mxu0 %v1489
        %1496 = vmatprep.subr.bf16.mxu0 0
        %1497 = vmatpush1.bf16.msra.mxu0 0
        %1498 = vmatprep.subr.bf16.mxu0 0
        %1499 = vmatpush1.bf16.msra.mxu0 0
        %1500 = vmatprep.subr.bf16.mxu0 0
        %1501 = vmatpush1.bf16.msra.mxu0 0
        %1502 = vmatprep.subr.bf16.mxu0 0
        %1503 = vmatpush1.bf16.msra.mxu0 0
        %1504 = vmatprep.subr.bf16.mxu0 0
        %1505 = vmatpush1.bf16.msra.mxu0 0
        %1506 = vmatprep.subr.bf16.mxu0 0
        %1507 = vmatpush1.bf16.msra.mxu0 0
        %1508 = vmatprep.subr.bf16.mxu0 0
        %1509 = vmatpush1.bf16.msra.mxu0 0
        %1510 = vmatprep.subr.bf16.mxu0 0
        %1511 = vmatpush1.bf16.msra.mxu0 0
        %1512 = vmatprep.subr.bf16.mxu0 0
        %1513 = vmatpush1.bf16.msra.mxu0 0
        %1514 = vmatprep.subr.bf16.mxu0 0
        %1515 = vmatpush1.bf16.msra.mxu0 0
        %1516 = vmatprep.subr.bf16.mxu0 0
        %1517 = vmatpush1.bf16.msra.mxu0 0
        %1518 = vmatprep.subr.bf16.mxu0 0
        %1519 = vmatpush1.bf16.msra.mxu0 0
        %1520 = vmatprep.subr.bf16.mxu0 0
        %1521 = vmatpush1.bf16.msra.mxu0 0
        %1522 = vmatprep.subr.bf16.mxu0 0
        %1523 = vmatpush1.bf16.msra.mxu0 0
        %1524 = vmatprep.subr.bf16.mxu0 0
        %1525 = vmatpush1.bf16.msra.mxu0 0
        %1526 = vmatprep.mubr.bf16.mxu0 0
        %1527 = vmatmul.mubr.bf16.gmra.mrb[0].mxu0 %v1492
        %v1528 = vpop.f32.mrb[0].mxu0
        %v1529 = vadd.f32 0.0, %v1528
        %v1530 = vpop.f32.mrb[0].mxu0
        %v1531 = vpop.f32.mrb[0].mxu0
        %v1532 = vadd.f32 0.0, %v1531
        %v1533 = vpop.f32.mrb[0].mxu0
        %1534 = vdwg.mxu0
        %v1535 = vrcp.pop %v1483
        %v1536 = vrcp.pop %v1486
        %v1537 = vmul.f32 %v1529, %v1535
        %v1538 = vmul.f32 %v1532, %v1536
        %v1539 = vld [vmem:[#allocation3] sm:$0xff]
        %v1540 = vld [vmem:[#allocation3 + $0x8] sm:$0xff]
        %v1541 = vpack.c.bf16 %v1538, %v1537
        %s1542 = scalar_lea.vmem [#allocation9], 12
        %v1543 = vld [vmem:[%s1542] sm:$0x3]
        %v1545 = vsel %vm358, %v1541, 0
        %v1548 = vsel %vm484, %v1543, 0
        %1550 = vmatprep.subr.bf16.mxu0 0
        %1551 = vmatpush1.bf16.msra.mxu0 %v1548
        %1552 = vmatprep.subr.bf16.mxu0 0
        %1553 = vmatpush1.bf16.msra.mxu0 0
        %1554 = vmatprep.subr.bf16.mxu0 0
        %1555 = vmatpush1.bf16.msra.mxu0 0
        %1556 = vmatprep.subr.bf16.mxu0 0
        %1557 = vmatpush1.bf16.msra.mxu0 0
        %1558 = vmatprep.subr.bf16.mxu0 0
        %1559 = vmatpush1.bf16.msra.mxu0 0
        %1560 = vmatprep.subr.bf16.mxu0 0
        %1561 = vmatpush1.bf16.msra.mxu0 0
        %1562 = vmatprep.subr.bf16.mxu0 0
        %1563 = vmatpush1.bf16.msra.mxu0 0
        %1564 = vmatprep.subr.bf16.mxu0 0
        %1565 = vmatpush1.bf16.msra.mxu0 0
        %1566 = vmatprep.subr.bf16.mxu0 0
        %1567 = vmatpush1.bf16.msra.mxu0 0
        %1568 = vmatprep.subr.bf16.mxu0 0
        %1569 = vmatpush1.bf16.msra.mxu0 0
        %1570 = vmatprep.subr.bf16.mxu0 0
        %1571 = vmatpush1.bf16.msra.mxu0 0
        %1572 = vmatprep.subr.bf16.mxu0 0
        %1573 = vmatpush1.bf16.msra.mxu0 0
        %1574 = vmatprep.subr.bf16.mxu0 0
        %1575 = vmatpush1.bf16.msra.mxu0 0
        %1576 = vmatprep.subr.bf16.mxu0 0
        %1577 = vmatpush1.bf16.msra.mxu0 0
        %1578 = vmatprep.subr.bf16.mxu0 0
        %1579 = vmatpush1.bf16.msra.mxu0 0
        %1580 = vmatprep.subr.bf16.mxu0 0
        %1581 = vmatpush1.bf16.msra.mxu0 0
        %1582 = vmatprep.mubr.bf16.mxu0 0
        %1583 = vmatmul.mubr.bf16.gmra.mrb[0].mxu0 %v1545
        %v1584 = vpop.f32.mrb[0].mxu0
        %v1585 = vadd.f32 0.0, %v1584
        %v1586 = vpop.f32.mrb[0].mxu0
        %v1587 = vpop.f32.mrb[0].mxu0
        %v1588 = vadd.f32 0.0, %v1587
        %v1589 = vpop.f32.mrb[0].mxu0
        %1590 = vdwg.mxu0
        %v1591 = vadd.f32 %v1539, %v1585
        %v1592 = vadd.f32 %v1540, %v1588
        %1593 = vst.msk [vmem:[#allocation3] sm:$0xff] %vm309, %v1591
        %1594 = vst.msk [vmem:[#allocation3 + $0x8] sm:$0xff] %vm309, %v1592
        %1595 = vrot.lane.b32.xlu0 %v354, 100
        %v1596 = vpop.permute.xlu0 %1595
        %1597 = vrot.lane.b32.xlu0 %v354, 68
        %v1598 = vpop.permute.xlu0 %1597
        %v1600 = vsel %vm358, %v1596, 0
        %v1603 = vsel %vm358, %v1598, 0
        %1605 = vmatprep.subr.bf16.mxu0 0
        %1606 = vmatpush1.bf16.xpose.msra.mxu0 %v1603
        %1607 = vmatprep.subr.bf16.mxu0 0
        %1608 = vmatpush1.bf16.xpose.msra.mxu0 0
        %1609 = vmatprep.subr.bf16.mxu0 0
        %1610 = vmatpush1.bf16.xpose.msra.mxu0 0
        %1611 = vmatprep.subr.bf16.mxu0 0
        %1612 = vmatpush1.bf16.xpose.msra.mxu0 0
        %1613 = vmatprep.subr.bf16.mxu0 0
        %1614 = vmatpush1.bf16.xpose.msra.mxu0 0
        %1615 = vmatprep.subr.bf16.mxu0 0
        %1616 = vmatpush1.bf16.xpose.msra.mxu0 0
        %1617 = vmatprep.subr.bf16.mxu0 0
        %1618 = vmatpush1.bf16.xpose.msra.mxu0 0
        %1619 = vmatprep.subr.bf16.mxu0 0
        %1620 = vmatpush1.bf16.xpose.msra.mxu0 0
        %1621 = vmatprep.subr.bf16.mxu0 0
        %1622 = vmatpush1.bf16.xpose.msra.mxu0 0
        %1623 = vmatprep.subr.bf16.mxu0 0
        %1624 = vmatpush1.bf16.xpose.msra.mxu0 0
        %1625 = vmatprep.subr.bf16.mxu0 0
        %1626 = vmatpush1.bf16.xpose.msra.mxu0 0
        %1627 = vmatprep.subr.bf16.mxu0 0
        %1628 = vmatpush1.bf16.xpose.msra.mxu0 0
        %1629 = vmatprep.subr.bf16.mxu0 0
        %1630 = vmatpush1.bf16.xpose.msra.mxu0 0
        %1631 = vmatprep.subr.bf16.mxu0 0
        %1632 = vmatpush1.bf16.xpose.msra.mxu0 0
        %1633 = vmatprep.subr.bf16.mxu0 0
        %1634 = vmatpush1.bf16.xpose.msra.mxu0 0
        %1635 = vmatprep.subr.bf16.mxu0 0
        %1636 = vmatpush1.bf16.xpose.msra.mxu0 0
        %1637 = vmatprep.mubr.bf16.mxu0 0
        %1638 = vmatmul.mubr.bf16.gmra.mrb[0].mxu0 %v1600
        %v1639 = vpop.f32.mrb[0].mxu0
        %v1640 = vadd.f32 0.0, %v1639
        %v1641 = vpop.f32.mrb[0].mxu0
        %v1642 = vpop.f32.mrb[0].mxu0
        %v1643 = vadd.f32 0.0, %v1642
        %v1644 = vpop.f32.mrb[0].mxu0
        %1645 = vdwg.mxu0
        %v1646 = vsel %vm406, %v1640, -inf
        %1647 = vmax.xlane.f32.xlu0 %v1646
        %v1648 = vpop.xlane.xlu0 %1647
        %v1649 = vsel %vm406, %v1643, -inf
        %1650 = vmax.xlane.f32.xlu0 %v1649
        %v1651 = vpop.xlane.xlu0 %1650
        %v1652 = vsub.f32 %v1640, %v1648
        %v1653 = vsub.f32 %v1643, %v1651
        %v1654 = vmul.f32 %v1652, 1.442695
        %v1655 = vpow.pop %v1654
        %v1656 = vmul.f32 %v1653, 1.442695
        %v1657 = vpow.pop %v1656
        %v1658 = vsel %vm406, %v1655, 0.0
        %1659 = vadd.xlane.f32.xlu0 %v1658
        %v1660 = vpop.xlane.xlu0 %1659
        %v1661 = vsel %vm406, %v1657, 0.0
        %1662 = vadd.xlane.f32.xlu0 %v1661
        %v1663 = vpop.xlane.xlu0 %1662
        %v1664 = vpack.c.bf16 %v1657, %v1655
        %1665 = vrot.lane.b32.xlu0 %v354, 36
        %v1666 = vpop.permute.xlu0 %1665
        %v1669 = vsel %vm406, %v1664, 0
        %1671 = vmatprep.subr.bf16.mxu0 0
        %1672 = vmatpush1.bf16.msra.mxu0 %v1666
        %1673 = vmatprep.subr.bf16.mxu0 0
        %1674 = vmatpush1.bf16.msra.mxu0 0
        %1675 = vmatprep.subr.bf16.mxu0 0
        %1676 = vmatpush1.bf16.msra.mxu0 0
        %1677 = vmatprep.subr.bf16.mxu0 0
        %1678 = vmatpush1.bf16.msra.mxu0 0
        %1679 = vmatprep.subr.bf16.mxu0 0
        %1680 = vmatpush1.bf16.msra.mxu0 0
        %1681 = vmatprep.subr.bf16.mxu0 0
        %1682 = vmatpush1.bf16.msra.mxu0 0
        %1683 = vmatprep.subr.bf16.mxu0 0
        %1684 = vmatpush1.bf16.msra.mxu0 0
        %1685 = vmatprep.subr.bf16.mxu0 0
        %1686 = vmatpush1.bf16.msra.mxu0 0
        %1687 = vmatprep.subr.bf16.mxu0 0
        %1688 = vmatpush1.bf16.msra.mxu0 0
        %1689 = vmatprep.subr.bf16.mxu0 0
        %1690 = vmatpush1.bf16.msra.mxu0 0
        %1691 = vmatprep.subr.bf16.mxu0 0
        %1692 = vmatpush1.bf16.msra.mxu0 0
        %1693 = vmatprep.subr.bf16.mxu0 0
        %1694 = vmatpush1.bf16.msra.mxu0 0
        %1695 = vmatprep.subr.bf16.mxu0 0
        %1696 = vmatpush1.bf16.msra.mxu0 0
        %1697 = vmatprep.subr.bf16.mxu0 0
        %1698 = vmatpush1.bf16.msra.mxu0 0
        %1699 = vmatprep.subr.bf16.mxu0 0
        %1700 = vmatpush1.bf16.msra.mxu0 0
        %1701 = vmatprep.subr.bf16.mxu0 0
        %1702 = vmatpush1.bf16.msra.mxu0 0
        %1703 = vmatprep.mubr.bf16.mxu0 0
        %1704 = vmatmul.mubr.bf16.gmra.mrb[0].mxu0 %v1669
        %v1705 = vpop.f32.mrb[0].mxu0
        %v1706 = vadd.f32 0.0, %v1705
        %v1707 = vpop.f32.mrb[0].mxu0
        %v1708 = vpop.f32.mrb[0].mxu0
        %v1709 = vadd.f32 0.0, %v1708
        %v1710 = vpop.f32.mrb[0].mxu0
        %1711 = vdwg.mxu0
        %v1712 = vrcp.pop %v1660
        %v1713 = vrcp.pop %v1663
        %v1714 = vmul.f32 %v1706, %v1712
        %v1715 = vmul.f32 %v1709, %v1713
        %v1716 = vld [vmem:[#allocation3] sm:$0xff]
        %v1717 = vld [vmem:[#allocation3 + $0x8] sm:$0xff]
        %v1718 = vpack.c.bf16 %v1715, %v1714
        %s1719 = scalar_lea.vmem [#allocation9], 14
        %v1720 = vld [vmem:[%s1719] sm:$0x3]
        %v1722 = vsel %vm358, %v1718, 0
        %v1725 = vsel %vm484, %v1720, 0
        %1727 = vmatprep.subr.bf16.mxu0 0
        %1728 = vmatpush1.bf16.msra.mxu0 %v1725
        %1729 = vmatprep.subr.bf16.mxu0 0
        %1730 = vmatpush1.bf16.msra.mxu0 0
        %1731 = vmatprep.subr.bf16.mxu0 0
        %1732 = vmatpush1.bf16.msra.mxu0 0
        %1733 = vmatprep.subr.bf16.mxu0 0
        %1734 = vmatpush1.bf16.msra.mxu0 0
        %1735 = vmatprep.subr.bf16.mxu0 0
        %1736 = vmatpush1.bf16.msra.mxu0 0
        %1737 = vmatprep.subr.bf16.mxu0 0
        %1738 = vmatpush1.bf16.msra.mxu0 0
        %1739 = vmatprep.subr.bf16.mxu0 0
        %1740 = vmatpush1.bf16.msra.mxu0 0
        %1741 = vmatprep.subr.bf16.mxu0 0
        %1742 = vmatpush1.bf16.msra.mxu0 0
        %1743 = vmatprep.subr.bf16.mxu0 0
        %1744 = vmatpush1.bf16.msra.mxu0 0
        %1745 = vmatprep.subr.bf16.mxu0 0
        %1746 = vmatpush1.bf16.msra.mxu0 0
        %1747 = vmatprep.subr.bf16.mxu0 0
        %1748 = vmatpush1.bf16.msra.mxu0 0
        %1749 = vmatprep.subr.bf16.mxu0 0
        %1750 = vmatpush1.bf16.msra.mxu0 0
        %1751 = vmatprep.subr.bf16.mxu0 0
        %1752 = vmatpush1.bf16.msra.mxu0 0
        %1753 = vmatprep.subr.bf16.mxu0 0
        %1754 = vmatpush1.bf16.msra.mxu0 0
        %1755 = vmatprep.subr.bf16.mxu0 0
        %1756 = vmatpush1.bf16.msra.mxu0 0
        %1757 = vmatprep.subr.bf16.mxu0 0
        %1758 = vmatpush1.bf16.msra.mxu0 0
        %1759 = vmatprep.mubr.bf16.mxu0 0
        %1760 = vmatmul.mubr.bf16.gmra.mrb[0].mxu0 %v1722
        %v1761 = vpop.f32.mrb[0].mxu0
        %v1762 = vadd.f32 0.0, %v1761
        %v1763 = vpop.f32.mrb[0].mxu0
        %v1764 = vpop.f32.mrb[0].mxu0
        %v1765 = vadd.f32 0.0, %v1764
        %v1766 = vpop.f32.mrb[0].mxu0
        %1767 = vdwg.mxu0
        %v1768 = vadd.f32 %v1716, %v1762
        %v1769 = vadd.f32 %v1717, %v1765
        %1770 = vst.msk [vmem:[#allocation3] sm:$0xff] %vm309, %v1768
        %1771 = vst.msk [vmem:[#allocation3 + $0x8] sm:$0xff] %vm309, %v1769
        // Predicated region
        $region53: #{tpu_custom_call.1} parent=35 // pred_check
          %p1772 = pneg %p274
        $region54: #{tpu_custom_call.1} parent=35 // pred_check_branch
          %1774 = sbr.rel (%p1772) target = $region56
        $region55: #{tpu_custom_call.1} parent=35 // pred_region
          %v1775 = vld [vmem:[#allocation3] sm:$0xff]
          %v1776 = vld [vmem:[#allocation3 + $0x8] sm:$0xff]
          %1777 = vst.msk [vmem:[%s272] sm:$0xff] %vm309, %v1775
          %1778 = vst.msk [vmem:[%s272 + $0x8] sm:$0xff] %vm309, %v1776
        $region56: #{tpu_custom_call.1} parent=35 // pred_fallthru
          _
        %s1779 = sand.u32 %s141, 1
        %s1780 = scalar_lea.sflag [#allocation6], %s1779
        %s1781 = sand.u32 %s141, 1
        %s1782 = smul.addr %s1781, 16
        %s1783 = scalar_lea.vmem [#allocation10], %s1782
        // Predicated region
        $region57: #{tpu_custom_call.1} parent=35 // pred_check
          %p1784 = pneg %p151
        $region58: #{tpu_custom_call.1} parent=35 // pred_check_branch
          %1786 = sbr.rel (%p1784) target = $region60
        $region59: #{tpu_custom_call.1} parent=35 // pred_region
          %s1788 = ssub.s32 256, 256
          %1789 = vsyncadd %s1780, %s1788
          %s1790 = smul.addr %s26, 2
          %s1791 = smul.addr %s1790, 128
          %s1792 = scalar_lea.hbm %s4, %s1791
          %s1793 = sshll.u32 %s1783, 4
          %s1794 = int_to_ptr.vmem [resolvable:$true] %s1793
          %1799 = dma.vmem_to_hbm [thread:$0]  %s1794, 256, %s1792, %s1780, 128, 128, 8
        $region60: #{tpu_custom_call.1} parent=35 // pred_fallthru
          _
      $region36: #{tpu_custom_call.1} parent=5 // pred_fallthru
        _
      %p1800 = scmp.le.s32.totalorder 2, %s17
      // Predicated region
      $region61: #{tpu_custom_call.1} parent=5 // pred_check
        %p1801 = pneg %p1800
      $region62: #{tpu_custom_call.1} parent=5 // pred_check_branch
        %1803 = sbr.rel (%p1801) target = $region64
      $region63: #{tpu_custom_call.1} parent=5 // pred_region
        %s1804 = ssub.s32 %s17, 2
        // Predicated region
        $region65: #{tpu_custom_call.1} parent=63 // pred_check
          %p1805 = pneg %p157
        $region66: #{tpu_custom_call.1} parent=63 // pred_check_branch
          %1807 = sbr.rel (%p1805) target = $region68
        $region67: #{tpu_custom_call.1} parent=63 // pred_region
          %s1808 = sand.u32 %s142, 1
          %s1809 = scalar_lea.sflag [#allocation6], %s1808
          %s1810 = sand.u32 %s142, 1
          %s1811 = smul.addr %s1810, 16
          %s1812 = scalar_lea.vmem [#allocation10], %s1811
          %1813 = dma.done %s1809, 256
        $region68: #{tpu_custom_call.1} parent=63 // pred_fallthru
          _
      $region64: #{tpu_custom_call.1} parent=5 // pred_fallthru
        _
    $region6: #{tpu_custom_call.1} parent=1 // loop_footer
      %s21 = sadd.s32 1, %s17
    $region7: #{tpu_custom_call.1} parent=1 // loop_footer_branch
      %16 = sbr.rel target = $region3
    $region8: #{tpu_custom_call.1} parent=1 // loop_exit
      _
    %1814 = vsyncpa [#allocation5], 1
    %s1815 = scalar_lea.sflag [#allocation5], 1
    %1816 = vsyncpa %s1815, 1
    %1817 = vsyncpa [#allocation8], 1
    %1818 = vsyncpa [#allocation6], 1
    %s1819 = scalar_lea.sflag [#allocation6], 1
    %1820 = vsyncpa %s1819, 1

</llo_original>
